<compile_context>
chip_gen: v6e
topology: v6e:2x2x1
jax: 0.10.0
libtpu: 0.0.40
codegen_flags: <defaults>
</compile_context>

<pallas_src>
import functools

import jax
import jax.numpy as jnp
from jax.experimental import pallas as pl
from jax.experimental.pallas import tpu as pltpu

_LANE = 128


def _dist_embed_kernel(coord_ref, coordT_ref, maskr_ref, maskc_ref, mu_ref,
                       w1_ref, b1_ref, w2_ref, b2_ref, w3_ref, b3_ref,
                       gamma_ref, beta_ref, out_ref, *, sigma, ln_eps):
    TM = coord_ref.shape[1]        # row tile
    TN = coordT_ref.shape[2]       # column tile
    K = mu_ref.shape[1]            # num_rbf
    E = w1_ref.shape[1]            # edge_embed_size

    c = coord_ref[0]               # (TM, 8)  row coords (xyz zero-padded to 8)
    ct = coordT_ref[0]             # (8, TN)  column coords, transposed
    mr = maskr_ref[0]              # (TM, 1)
    mc = maskc_ref[0]              # (1, TN)
    em = mr * mc                   # (TM, TN) edge-mask outer product (in-kernel)

    # pairwise squared distance on the MXU: ||a||^2 + ||b||^2 - 2 a.b
    g = jnp.dot(c, ct, preferred_element_type=jnp.float32)      # (TM, TN)
    rr = jnp.sum(c * c, axis=1, keepdims=True)                   # (TM, 1)
    rc = jnp.sum(ct * ct, axis=0, keepdims=True)                 # (1, TN)
    radial = jnp.maximum(rr + rc - 2.0 * g, 0.0)                 # clamp round-off
    dist = jnp.sqrt(radial + 1e-10) * em                         # (TM, TN)

    # RBF expansion, masked (same masking order as the reference)
    mu = mu_ref[...].reshape(1, 1, K)
    z = (dist[:, :, None] - mu) * (1.0 / sigma)                  # (TM, TN, K)
    x = jnp.exp(-(z * z)) * em[:, :, None]                       # (TM, TN, K) f32

    # MLP: Linear -> ReLU -> Linear -> ReLU -> Linear -> LayerNorm
    # bf16 MXU inputs, f32 accumulation / biases / LayerNorm statistics.
    x2 = x.reshape(TM * TN, K).astype(jnp.bfloat16)              # leading-dim merge
    h = jnp.dot(x2, w1_ref[...], preferred_element_type=jnp.float32) + b1_ref[...]
    h = jnp.maximum(h, 0.0)
    h = jnp.dot(h.astype(jnp.bfloat16), w2_ref[...],
                preferred_element_type=jnp.float32) + b2_ref[...]
    h = jnp.maximum(h, 0.0)
    h = jnp.dot(h.astype(jnp.bfloat16), w3_ref[...],
                preferred_element_type=jnp.float32) + b3_ref[...]

    mean = jnp.mean(h, axis=-1, keepdims=True)
    cen = h - mean
    var = jnp.mean(cen * cen, axis=-1, keepdims=True)
    y = cen * jax.lax.rsqrt(var + ln_eps)
    y = y * gamma_ref[...] + beta_ref[...]

    out_ref[...] = y.reshape(1, TM, TN, E).astype(out_ref.dtype)


def _vmem_limits():
    """(vmem_limit_bytes, tile-selection budget) sized per TPU generation."""
    phys = 64 * 1024 * 1024            # conservative default (v7x per-TC VMEM)
    try:
        info = pltpu.get_tpu_info()
        for attr in ("vmem_capacity_bytes", "vmem_bytes", "vmem_size_bytes"):
            v = getattr(info, attr, None)
            if v:
                phys = int(v)
                break
    except Exception:
        pass
    limit = max(32 * 1024 * 1024, min(phys - 16 * 1024 * 1024, int(phys * 0.85)))
    budget = int(limit * 0.7)          # headroom for compiler internal scratch
    return limit, budget


def _per_step_vmem_bytes(tm, tn, k, e, out_bytes):
    """Conservative per-grid-step footprint incl. lane padding + double-buffered out."""
    padk = -(-k // _LANE) * _LANE
    pade = -(-e // _LANE) * _LANE
    pairs = tm * tn
    # live in-kernel temporaries: x(f32)+x(bf16), 2 f32 hiddens + 1 bf16 copy, y(f32)
    tmp = pairs * (padk * 4 + padk * 2 + 2 * pade * 4 + pade * 2 + pade * 4)
    out_blk = 2 * pairs * pade * out_bytes                    # double-buffered output
    in_blk = 2 * (tm * 8 * 4 + 8 * tn * 4 + tm * 4 + tn * 4) + (1 << 16)
    return tmp + out_blk + in_blk


def _pick_tiles(n, k, e, out_bytes, budget):
    """Returns (padded N, row tile TM, column tile TN)."""
    np8 = max(8, -(-n // 8) * 8)
    if np8 <= 1024:
        n_pad, tn = np8, np8                      # single column block
    else:
        n_pad = -(-n // 128) * 128
        tn = 128
        for cand in (512, 384, 256):
            if n_pad % cand == 0:
                tn = cand
                break
    tm = 8
    for cand in (128, 64, 32, 16, 8):
        if n_pad % cand == 0 and _per_step_vmem_bytes(cand, tn, k, e, out_bytes) <= budget:
            tm = cand
            break
    return n_pad, tm, tn


def dist_embedder_forward(rigid, ligand_pos, bb_ligand_mask, params, *,
                          dist_min, dist_max, num_rbf, out_dtype=jnp.bfloat16):
    """rigid: (B, N_res, 7) [quat(4), trans(3)], ligand_pos: (B, N_lig, 3),
    bb_ligand_mask: (B, N_res + N_lig).  Returns (B, N, N, E) in out_dtype."""
    # The CA atom sits at the origin of the backbone frame, so
    # to_atom37(Rigid.from_tensor_7(rigid))[-1][:, :, 1] is exactly the
    # translation component of the rigid (the quaternion does not affect it).
    # TODO(synk): full idealized atom37 reconstruction is not reproduced since
    # only CA is used by this module.
    curr_bb_pos = rigid[..., 4:7]
    coord = jnp.concatenate([curr_bb_pos, ligand_pos], axis=1).astype(jnp.float32)
    B, N, _ = coord.shape
    mask = bb_ligand_mask.astype(jnp.float32)

    w1, b1, w2, b2, w3, b3, gamma, beta = params
    K, E = w1.shape
    out_bytes = jnp.dtype(out_dtype).itemsize

    vmem_limit, budget = _vmem_limits()
    Np, TM, TN = _pick_tiles(N, K, E, out_bytes, budget)

    # Pad the joint residue+ligand axis; padded rows/cols are masked out and
    # sliced off after the call.
    if Np != N:
        coord = jnp.pad(coord, ((0, 0), (0, Np - N), (0, 0)))
        mask = jnp.pad(mask, ((0, 0), (0, Np - N)))
    coord = jnp.pad(coord, ((0, 0), (0, 0), (0, 5)))      # xyz -> 8 channels (zeros)
    coord_t = jnp.swapaxes(coord, 1, 2)                   # (B, 8, Np)
    mask_r = mask[:, :, None]                             # (B, Np, 1)
    mask_c = mask[:, None, :]                             # (B, 1, Np)

    mu = jnp.linspace(dist_min, dist_max, num_rbf,
                      dtype=jnp.float32).reshape(1, num_rbf)
    sigma = (dist_max - dist_min) / num_rbf

    # bf16 weights for the MXU; biases / LayerNorm affine stay f32.
    w1b = w1.astype(jnp.bfloat16)
    w2b = w2.astype(jnp.bfloat16)
    w3b = w3.astype(jnp.bfloat16)

    kernel = functools.partial(_dist_embed_kernel, sigma=float(sigma), ln_eps=1e-5)
    rowb = lambda i, b, j: (b, i, 0)       # row-tiled 3D inputs
    colb = lambda i, b, j: (b, 0, j)       # column-tiled 3D inputs
    full = lambda i, b, j: (0, 0)          # untiled 2D parameters

    out = pl.pallas_call(
        kernel,
        out_shape=jax.ShapeDtypeStruct((B, Np, Np, E), out_dtype),
        grid_spec=pltpu.PrefetchScalarGridSpec(
            num_scalar_prefetch=0,
            grid=(Np // TM, B, Np // TN),     # high-trip-count row axis leads
            in_specs=[
                pl.BlockSpec((1, TM, 8), rowb),     # coord rows
                pl.BlockSpec((1, 8, TN), colb),     # coord^T columns
                pl.BlockSpec((1, TM, 1), rowb),     # mask rows
                pl.BlockSpec((1, 1, TN), colb),     # mask cols
                pl.BlockSpec((1, K), full),         # mu
                pl.BlockSpec((K, E), full),         # W1 (bf16)
                pl.BlockSpec((1, E), full),         # b1
                pl.BlockSpec((E, E), full),         # W2 (bf16)
                pl.BlockSpec((1, E), full),         # b2
                pl.BlockSpec((E, E), full),         # W3 (bf16)
                pl.BlockSpec((1, E), full),         # b3
                pl.BlockSpec((1, E), full),         # gamma
                pl.BlockSpec((1, E), full),         # beta
            ],
            out_specs=pl.BlockSpec((1, TM, TN, E), lambda i, b, j: (b, i, j, 0)),
        ),
        compiler_params=pltpu.CompilerParams(
            dimension_semantics=("parallel", "parallel", "parallel"),
            vmem_limit_bytes=int(vmem_limit),
        ),
    )(coord, coord_t, mask_r, mask_c, mu, w1b, b1, w2b, b2, w3b, b3, gamma, beta)

    return out[:, :N, :N, :]


def _reference_dist_embedder(coord, mask, params, mu, sigma, ln_eps=1e-5):
    """Pure-JAX f32 reference matching the PyTorch DistEmbedder math."""
    em = mask[:, :, None] * mask[:, None, :]
    diff = coord[:, :, None, :] - coord[:, None, :, :]
    radial = jnp.sum(diff * diff, axis=-1)
    dist = jnp.sqrt(radial + 1e-10) * em
    z = (dist[..., None] - mu.reshape(1, 1, 1, -1)) / sigma
    x = jnp.exp(-(z * z)) * em[..., None]
    w1, b1, w2, b2, w3, b3, gamma, beta = params
    h = jnp.maximum(x @ w1 + b1, 0.0)
    h = jnp.maximum(h @ w2 + b2, 0.0)
    h = h @ w3 + b3
    m = jnp.mean(h, axis=-1, keepdims=True)
    c = h - m
    v = jnp.mean(c * c, axis=-1, keepdims=True)
    return (c * jax.lax.rsqrt(v + ln_eps)) * gamma + beta


if __name__ == "__main__":
    # small shapes consistent with the module's forward
    B, N_RES, N_LIG = 2, 16, 8
    N = N_RES + N_LIG            # 24 total positions -> grid (3, 2, 1) with TM=8
    NUM_RBF = 16                 # model_conf.num_rbf_size
    EDGE_EMBED = 32              # model_conf.edge_embed_size
    DIST_MIN, DIST_MAX = 0.0, 20.0   # bb_ligand_rbf_d_min / d_max

    key = jax.random.PRNGKey(0)
    (k_rigid, k_lig, k_mask,
     kw1, kb1, kw2, kb2, kw3, kb3) = jax.random.split(key, 9)

    # inputs
    rigid = jax.random.normal(k_rigid, (B, N_RES, 7), jnp.float32)
    rigid = rigid.at[..., 4:7].multiply(5.0)                 # spread translations
    ligand_pos = 5.0 * jax.random.normal(k_lig, (B, N_LIG, 3), jnp.float32)
    bb_ligand_mask = (jax.random.uniform(k_mask, (B, N)) > 0.2).astype(jnp.float32)

    # deterministic parameter init (weights stored as (in, out): y = x @ W + b)
    s1 = 1.0 / (NUM_RBF ** 0.5)
    s2 = 1.0 / (EDGE_EMBED ** 0.5)
    params = (
        s1 * jax.random.normal(kw1, (NUM_RBF, EDGE_EMBED), jnp.float32),
        0.01 * jax.random.normal(kb1, (1, EDGE_EMBED), jnp.float32),
        s2 * jax.random.normal(kw2, (EDGE_EMBED, EDGE_EMBED), jnp.float32),
        0.01 * jax.random.normal(kb2, (1, EDGE_EMBED), jnp.float32),
        s2 * jax.random.normal(kw3, (EDGE_EMBED, EDGE_EMBED), jnp.float32),
        0.01 * jax.random.normal(kb3, (1, EDGE_EMBED), jnp.float32),
        jnp.ones((1, EDGE_EMBED), jnp.float32),               # LayerNorm gamma
        jnp.zeros((1, EDGE_EMBED), jnp.float32),              # LayerNorm beta
    )

    out = dist_embedder_forward(
        rigid, ligand_pos, bb_ligand_mask, params,
        dist_min=DIST_MIN, dist_max=DIST_MAX, num_rbf=NUM_RBF)
    out = jax.block_until_ready(out)

    assert out.shape == (B, N, N, EDGE_EMBED)
    assert out.dtype == jnp.bfloat16

    # correctness check against a pure-JAX f32 reference (kernel uses bf16 MXU
    # inputs and a bf16 output store, so tolerances are bf16-sized)
    coord = jnp.concatenate([rigid[..., 4:7], ligand_pos], axis=1).astype(jnp.float32)
    mu = jnp.linspace(DIST_MIN, DIST_MAX, NUM_RBF, dtype=jnp.float32)
    sigma = (DIST_MAX - DIST_MIN) / NUM_RBF
    ref = _reference_dist_embedder(coord, bb_ligand_mask.astype(jnp.float32),
                                   params, mu, sigma)
    diff = jnp.abs(out.astype(jnp.float32) - ref)
    max_err = float(jnp.max(diff))
    mean_err = float(jnp.mean(diff))
    assert max_err < 1.5e-1, f"max abs err vs reference: {max_err}"
    assert mean_err < 2e-2, f"mean abs err vs reference: {mean_err}"

    print("KERNEL_OK")
</pallas_src>

<mosaic_0001>
module attributes {stable_mosaic.version = 11 : i64} {
  func.func @_dist_embed_kernel(%arg0: i32, %arg1: i32, %arg2: i32, %arg3: memref<1x8x8xf32, #tpu.memory_space<vmem>>, %arg4: memref<1x8x24xf32, #tpu.memory_space<vmem>>, %arg5: memref<1x8x1xf32, #tpu.memory_space<vmem>>, %arg6: memref<1x1x24xf32, #tpu.memory_space<vmem>>, %arg7: memref<1x16xf32, #tpu.memory_space<vmem>>, %arg8: memref<16x32xbf16, #tpu.memory_space<vmem>>, %arg9: memref<1x32xf32, #tpu.memory_space<vmem>>, %arg10: memref<32x32xbf16, #tpu.memory_space<vmem>>, %arg11: memref<1x32xf32, #tpu.memory_space<vmem>>, %arg12: memref<32x32xbf16, #tpu.memory_space<vmem>>, %arg13: memref<1x32xf32, #tpu.memory_space<vmem>>, %arg14: memref<1x32xf32, #tpu.memory_space<vmem>>, %arg15: memref<1x32xf32, #tpu.memory_space<vmem>>, %arg16: memref<1x8x24x32xbf16, #tpu.memory_space<vmem>>) attributes {dimension_semantics = [#tpu.dimension_semantics<parallel>, #tpu.dimension_semantics<parallel>, #tpu.dimension_semantics<parallel>], iteration_bounds = array<i64: 3, 2, 1>, scalar_prefetch = 0 : i64, scratch_operands = 0 : i64, tpu.core_type = #tpu.core_type<tc>, window_params = [{transform_indices = @transform_0, window_bounds = array<i64: 1, 8, 8>}, {transform_indices = @transform_1, window_bounds = array<i64: 1, 8, 24>}, {transform_indices = @transform_2, window_bounds = array<i64: 1, 8, 1>}, {transform_indices = @transform_3, window_bounds = array<i64: 1, 1, 24>}, {pipeline_mode = #tpu.pipeline_mode<synchronous>, transform_indices = @transform_4, window_bounds = array<i64: 1, 16>}, {pipeline_mode = #tpu.pipeline_mode<synchronous>, transform_indices = @transform_5, window_bounds = array<i64: 16, 32>}, {pipeline_mode = #tpu.pipeline_mode<synchronous>, transform_indices = @transform_6, window_bounds = array<i64: 1, 32>}, {pipeline_mode = #tpu.pipeline_mode<synchronous>, transform_indices = @transform_7, window_bounds = array<i64: 32, 32>}, {pipeline_mode = #tpu.pipeline_mode<synchronous>, transform_indices = @transform_8, window_bounds = array<i64: 1, 32>}, {pipeline_mode = #tpu.pipeline_mode<synchronous>, transform_indices = @transform_9, window_bounds = array<i64: 32, 32>}, {pipeline_mode = #tpu.pipeline_mode<synchronous>, transform_indices = @transform_10, window_bounds = array<i64: 1, 32>}, {pipeline_mode = #tpu.pipeline_mode<synchronous>, transform_indices = @transform_11, window_bounds = array<i64: 1, 32>}, {pipeline_mode = #tpu.pipeline_mode<synchronous>, transform_indices = @transform_12, window_bounds = array<i64: 1, 32>}, {transform_indices = @transform_13, window_bounds = array<i64: 1, 8, 24, 32>}]} {
    %c0 = arith.constant 0 : index
    %c0_0 = arith.constant 0 : index
    %c0_1 = arith.constant 0 : index
    %0 = vector.load %arg3[%c0, %c0_0, %c0_1] : memref<1x8x8xf32, #tpu.memory_space<vmem>>, vector<1x8x8xf32>
    %1 = vector.shape_cast %0 : vector<1x8x8xf32> to vector<8x8xf32>
    %c0_2 = arith.constant 0 : index
    %c0_3 = arith.constant 0 : index
    %c0_4 = arith.constant 0 : index
    %2 = vector.load %arg4[%c0_2, %c0_3, %c0_4] : memref<1x8x24xf32, #tpu.memory_space<vmem>>, vector<1x8x24xf32>
    %3 = vector.shape_cast %2 : vector<1x8x24xf32> to vector<8x24xf32>
    %c0_5 = arith.constant 0 : index
    %c0_6 = arith.constant 0 : index
    %c0_7 = arith.constant 0 : index
    %4 = vector.load %arg5[%c0_5, %c0_6, %c0_7] : memref<1x8x1xf32, #tpu.memory_space<vmem>>, vector<1x8x1xf32>
    %5 = vector.shape_cast %4 : vector<1x8x1xf32> to vector<8x1xf32>
    %c0_8 = arith.constant 0 : index
    %c0_9 = arith.constant 0 : index
    %c0_10 = arith.constant 0 : index
    %6 = vector.load %arg6[%c0_8, %c0_9, %c0_10] : memref<1x1x24xf32, #tpu.memory_space<vmem>>, vector<1x1x24xf32>
    %7 = vector.shape_cast %6 : vector<1x1x24xf32> to vector<1x24xf32>
    %8 = vector.broadcast %5 : vector<8x1xf32> to vector<8x24xf32>
    %9 = vector.broadcast %7 : vector<1x24xf32> to vector<8x24xf32>
    %10 = arith.mulf %8, %9 : vector<8x24xf32>
    %cst = arith.constant dense<0.000000e+00> : vector<8x24xf32>
    %11 = tpu.matmul %1, %3, %cst {dimension_numbers = #tpu.dot_dimension_numbers<[1], [0], [0], [1], [0, 0, 1, 1], [], []>} : vector<8x8xf32>, vector<8x24xf32>, vector<8x24xf32> -> vector<8x24xf32>
    %12 = arith.mulf %1, %1 : vector<8x8xf32>
    %cst_11 = arith.constant dense<0.000000e+00> : vector<8xf32>
    %13 = vector.multi_reduction <add>, %12, %cst_11 [1] : vector<8x8xf32> to vector<8xf32>
    %14 = vector.shape_cast %13 : vector<8xf32> to vector<8x1xf32>
    %15 = arith.mulf %3, %3 : vector<8x24xf32>
    %cst_12 = arith.constant dense<0.000000e+00> : vector<24xf32>
    %16 = vector.multi_reduction <add>, %15, %cst_12 [0] : vector<8x24xf32> to vector<24xf32>
    %17 = vector.shape_cast %16 : vector<24xf32> to vector<1x24xf32>
    %18 = vector.broadcast %14 : vector<8x1xf32> to vector<8x24xf32>
    %19 = vector.broadcast %17 : vector<1x24xf32> to vector<8x24xf32>
    %20 = arith.addf %18, %19 : vector<8x24xf32>
    %cst_13 = arith.constant 2.000000e+00 : f32
    %21 = vector.broadcast %cst_13 : f32 to vector<8x24xf32>
    %22 = arith.mulf %21, %11 : vector<8x24xf32>
    %23 = arith.subf %20, %22 : vector<8x24xf32>
    %cst_14 = arith.constant 0.000000e+00 : f32
    %24 = vector.broadcast %cst_14 : f32 to vector<8x24xf32>
    %25 = arith.maximumf %23, %24 : vector<8x24xf32>
    %cst_15 = arith.constant 1.000000e-10 : f32
    %26 = vector.broadcast %cst_15 : f32 to vector<8x24xf32>
    %27 = arith.addf %25, %26 : vector<8x24xf32>
    %28 = math.sqrt %27 : vector<8x24xf32>
    %29 = arith.mulf %28, %10 : vector<8x24xf32>
    %c0_16 = arith.constant 0 : index
    %c0_17 = arith.constant 0 : index
    %30 = vector.load %arg7[%c0_16, %c0_17] : memref<1x16xf32, #tpu.memory_space<vmem>>, vector<1x16xf32>
    %31 = vector.shape_cast %30 : vector<1x16xf32> to vector<1x1x16xf32>
    %32 = vector.shape_cast %29 : vector<8x24xf32> to vector<8x24x1xf32>
    %33 = vector.broadcast %32 : vector<8x24x1xf32> to vector<8x24x16xf32>
    %34 = vector.broadcast %31 : vector<1x1x16xf32> to vector<8x24x16xf32>
    %35 = arith.subf %33, %34 : vector<8x24x16xf32>
    %cst_18 = arith.constant 8.000000e-01 : f32
    %36 = vector.broadcast %cst_18 : f32 to vector<8x24x16xf32>
    %37 = arith.mulf %35, %36 : vector<8x24x16xf32>
    %38 = arith.mulf %37, %37 : vector<8x24x16xf32>
    %cst_19 = arith.constant 0.000000e+00 : f32
    %39 = vector.broadcast %cst_19 : f32 to vector<8x24x16xf32>
    %40 = arith.subf %39, %38 : vector<8x24x16xf32>
    %41 = math.exp %40 : vector<8x24x16xf32>
    %42 = vector.shape_cast %10 : vector<8x24xf32> to vector<8x24x1xf32>
    %43 = vector.broadcast %42 : vector<8x24x1xf32> to vector<8x24x16xf32>
    %44 = arith.mulf %41, %43 : vector<8x24x16xf32>
    %45 = vector.shape_cast %44 : vector<8x24x16xf32> to vector<192x16xf32>
    %46 = arith.truncf %45 : vector<192x16xf32> to vector<192x16xbf16>
    %c0_20 = arith.constant 0 : index
    %c0_21 = arith.constant 0 : index
    %47 = vector.load %arg8[%c0_20, %c0_21] : memref<16x32xbf16, #tpu.memory_space<vmem>>, vector<16x32xbf16>
    %cst_22 = arith.constant dense<0.000000e+00> : vector<192x32xf32>
    %48 = tpu.matmul %46, %47, %cst_22 {dimension_numbers = #tpu.dot_dimension_numbers<[1], [0], [0], [1], [0, 0, 1, 1], [], []>} : vector<192x16xbf16>, vector<16x32xbf16>, vector<192x32xf32> -> vector<192x32xf32>
    %c0_23 = arith.constant 0 : index
    %c0_24 = arith.constant 0 : index
    %49 = vector.load %arg9[%c0_23, %c0_24] : memref<1x32xf32, #tpu.memory_space<vmem>>, vector<1x32xf32>
    %50 = vector.broadcast %49 : vector<1x32xf32> to vector<192x32xf32>
    %51 = arith.addf %48, %50 : vector<192x32xf32>
    %cst_25 = arith.constant 0.000000e+00 : f32
    %52 = vector.broadcast %cst_25 : f32 to vector<192x32xf32>
    %53 = arith.maximumf %51, %52 : vector<192x32xf32>
    %54 = arith.truncf %53 : vector<192x32xf32> to vector<192x32xbf16>
    %c0_26 = arith.constant 0 : index
    %c0_27 = arith.constant 0 : index
    %55 = vector.load %arg10[%c0_26, %c0_27] : memref<32x32xbf16, #tpu.memory_space<vmem>>, vector<32x32xbf16>
    %cst_28 = arith.constant dense<0.000000e+00> : vector<192x32xf32>
    %56 = tpu.matmul %54, %55, %cst_28 {dimension_numbers = #tpu.dot_dimension_numbers<[1], [0], [0], [1], [0, 0, 1, 1], [], []>} : vector<192x32xbf16>, vector<32x32xbf16>, vector<192x32xf32> -> vector<192x32xf32>
    %c0_29 = arith.constant 0 : index
    %c0_30 = arith.constant 0 : index
    %57 = vector.load %arg11[%c0_29, %c0_30] : memref<1x32xf32, #tpu.memory_space<vmem>>, vector<1x32xf32>
    %58 = vector.broadcast %57 : vector<1x32xf32> to vector<192x32xf32>
    %59 = arith.addf %56, %58 : vector<192x32xf32>
    %cst_31 = arith.constant 0.000000e+00 : f32
    %60 = vector.broadcast %cst_31 : f32 to vector<192x32xf32>
    %61 = arith.maximumf %59, %60 : vector<192x32xf32>
    %62 = arith.truncf %61 : vector<192x32xf32> to vector<192x32xbf16>
    %c0_32 = arith.constant 0 : index
    %c0_33 = arith.constant 0 : index
    %63 = vector.load %arg12[%c0_32, %c0_33] : memref<32x32xbf16, #tpu.memory_space<vmem>>, vector<32x32xbf16>
    %cst_34 = arith.constant dense<0.000000e+00> : vector<192x32xf32>
    %64 = tpu.matmul %62, %63, %cst_34 {dimension_numbers = #tpu.dot_dimension_numbers<[1], [0], [0], [1], [0, 0, 1, 1], [], []>} : vector<192x32xbf16>, vector<32x32xbf16>, vector<192x32xf32> -> vector<192x32xf32>
    %c0_35 = arith.constant 0 : index
    %c0_36 = arith.constant 0 : index
    %65 = vector.load %arg13[%c0_35, %c0_36] : memref<1x32xf32, #tpu.memory_space<vmem>>, vector<1x32xf32>
    %66 = vector.broadcast %65 : vector<1x32xf32> to vector<192x32xf32>
    %67 = arith.addf %64, %66 : vector<192x32xf32>
    %cst_37 = arith.constant dense<0.000000e+00> : vector<192xf32>
    %68 = vector.multi_reduction <add>, %67, %cst_37 [1] : vector<192x32xf32> to vector<192xf32>
    %69 = vector.shape_cast %68 : vector<192xf32> to vector<192x1xf32>
    %cst_38 = arith.constant 3.200000e+01 : f32
    %70 = vector.broadcast %cst_38 : f32 to vector<192x1xf32>
    %71 = arith.divf %69, %70 : vector<192x1xf32>
    %72 = vector.broadcast %71 : vector<192x1xf32> to vector<192x32xf32>
    %73 = arith.subf %67, %72 : vector<192x32xf32>
    %74 = arith.mulf %73, %73 : vector<192x32xf32>
    %cst_39 = arith.constant dense<0.000000e+00> : vector<192xf32>
    %75 = vector.multi_reduction <add>, %74, %cst_39 [1] : vector<192x32xf32> to vector<192xf32>
    %76 = vector.shape_cast %75 : vector<192xf32> to vector<192x1xf32>
    %cst_40 = arith.constant 3.200000e+01 : f32
    %77 = vector.broadcast %cst_40 : f32 to vector<192x1xf32>
    %78 = arith.divf %76, %77 : vector<192x1xf32>
    %cst_41 = arith.constant 9.99999974E-6 : f32
    %79 = vector.broadcast %cst_41 : f32 to vector<192x1xf32>
    %80 = arith.addf %78, %79 : vector<192x1xf32>
    %81 = math.rsqrt %80 : vector<192x1xf32>
    %82 = vector.broadcast %81 : vector<192x1xf32> to vector<192x32xf32>
    %83 = arith.mulf %73, %82 : vector<192x32xf32>
    %c0_42 = arith.constant 0 : index
    %c0_43 = arith.constant 0 : index
    %84 = vector.load %arg14[%c0_42, %c0_43] : memref<1x32xf32, #tpu.memory_space<vmem>>, vector<1x32xf32>
    %85 = vector.broadcast %84 : vector<1x32xf32> to vector<192x32xf32>
    %86 = arith.mulf %83, %85 : vector<192x32xf32>
    %c0_44 = arith.constant 0 : index
    %c0_45 = arith.constant 0 : index
    %87 = vector.load %arg15[%c0_44, %c0_45] : memref<1x32xf32, #tpu.memory_space<vmem>>, vector<1x32xf32>
    %88 = vector.broadcast %87 : vector<1x32xf32> to vector<192x32xf32>
    %89 = arith.addf %86, %88 : vector<192x32xf32>
    %90 = vector.shape_cast %89 : vector<192x32xf32> to vector<1x8x24x32xf32>
    %91 = arith.truncf %90 : vector<1x8x24x32xf32> to vector<1x8x24x32xbf16>
    %c0_46 = arith.constant 0 : index
    %c0_47 = arith.constant 0 : index
    %c0_48 = arith.constant 0 : index
    %c0_49 = arith.constant 0 : index
    %92 = vector.load %arg16[%c0_46, %c0_47, %c0_48, %c0_49] : memref<1x8x24x32xbf16, #tpu.memory_space<vmem>>, vector<1x8x24x32xbf16>
    tpu.vector_store %arg16[%c0_46, %c0_47, %c0_48, %c0_49], %91 {strides = array<i32>} : memref<1x8x24x32xbf16, #tpu.memory_space<vmem>>, vector<1x8x24x32xbf16>,
    return
  }
  func.func @transform_0(%arg0: i32, %arg1: i32, %arg2: i32) -> (i32, i32, i32) {
    %c0_i32 = arith.constant 0 : i32
    %c0_i32_0 = arith.constant 0 : i32
    return %arg1, %arg0, %c0_i32 : i32, i32, i32
  }
  func.func @transform_1(%arg0: i32, %arg1: i32, %arg2: i32) -> (i32, i32, i32) {
    %c0_i32 = arith.constant 0 : i32
    %c0_i32_0 = arith.constant 0 : i32
    return %arg1, %c0_i32, %arg2 : i32, i32, i32
  }
  func.func @transform_2(%arg0: i32, %arg1: i32, %arg2: i32) -> (i32, i32, i32) {
    %c0_i32 = arith.constant 0 : i32
    %c0_i32_0 = arith.constant 0 : i32
    return %arg1, %arg0, %c0_i32 : i32, i32, i32
  }
  func.func @transform_3(%arg0: i32, %arg1: i32, %arg2: i32) -> (i32, i32, i32) {
    %c0_i32 = arith.constant 0 : i32
    %c0_i32_0 = arith.constant 0 : i32
    return %arg1, %c0_i32, %arg2 : i32, i32, i32
  }
  func.func @transform_4(%arg0: i32, %arg1: i32, %arg2: i32) -> (i32, i32) {
    %c0_i32 = arith.constant 0 : i32
    %c0_i32_0 = arith.constant 0 : i32
    %c0_i32_1 = arith.constant 0 : i32
    return %c0_i32, %c0_i32_0 : i32, i32
  }
  func.func @transform_5(%arg0: i32, %arg1: i32, %arg2: i32) -> (i32, i32) {
    %c0_i32 = arith.constant 0 : i32
    %c0_i32_0 = arith.constant 0 : i32
    %c0_i32_1 = arith.constant 0 : i32
    return %c0_i32, %c0_i32_0 : i32, i32
  }
  func.func @transform_6(%arg0: i32, %arg1: i32, %arg2: i32) -> (i32, i32) {
    %c0_i32 = arith.constant 0 : i32
    %c0_i32_0 = arith.constant 0 : i32
    %c0_i32_1 = arith.constant 0 : i32
    return %c0_i32, %c0_i32_0 : i32, i32
  }
  func.func @transform_7(%arg0: i32, %arg1: i32, %arg2: i32) -> (i32, i32) {
    %c0_i32 = arith.constant 0 : i32
    %c0_i32_0 = arith.constant 0 : i32
    %c0_i32_1 = arith.constant 0 : i32
    return %c0_i32, %c0_i32_0 : i32, i32
  }
  func.func @transform_8(%arg0: i32, %arg1: i32, %arg2: i32) -> (i32, i32) {
    %c0_i32 = arith.constant 0 : i32
    %c0_i32_0 = arith.constant 0 : i32
    %c0_i32_1 = arith.constant 0 : i32
    return %c0_i32, %c0_i32_0 : i32, i32
  }
  func.func @transform_9(%arg0: i32, %arg1: i32, %arg2: i32) -> (i32, i32) {
    %c0_i32 = arith.constant 0 : i32
    %c0_i32_0 = arith.constant 0 : i32
    %c0_i32_1 = arith.constant 0 : i32
    return %c0_i32, %c0_i32_0 : i32, i32
  }
  func.func @transform_10(%arg0: i32, %arg1: i32, %arg2: i32) -> (i32, i32) {
    %c0_i32 = arith.constant 0 : i32
    %c0_i32_0 = arith.constant 0 : i32
    %c0_i32_1 = arith.constant 0 : i32
    return %c0_i32, %c0_i32_0 : i32, i32
  }
  func.func @transform_11(%arg0: i32, %arg1: i32, %arg2: i32) -> (i32, i32) {
    %c0_i32 = arith.constant 0 : i32
    %c0_i32_0 = arith.constant 0 : i32
    %c0_i32_1 = arith.constant 0 : i32
    return %c0_i32, %c0_i32_0 : i32, i32
  }
  func.func @transform_12(%arg0: i32, %arg1: i32, %arg2: i32) -> (i32, i32) {
    %c0_i32 = arith.constant 0 : i32
    %c0_i32_0 = arith.constant 0 : i32
    %c0_i32_1 = arith.constant 0 : i32
    return %c0_i32, %c0_i32_0 : i32, i32
  }
  func.func @transform_13(%arg0: i32, %arg1: i32, %arg2: i32) -> (i32, i32, i32, i32) {
    %c0_i32 = arith.constant 0 : i32
    %c0_i32_0 = arith.constant 0 : i32
    return %arg1, %arg0, %arg2, %c0_i32 : i32, i32, i32, i32
  }
}

</mosaic_0001>

<llo_original>
// kernel: tpu_custom_call.1
$region0: #{tpu_custom_call.1}
  #allocation0 [shape = 'u32[]', space=smem, size = 0x4, offset = 0x4, fixed_abs, tag = 'smem constant byte address 0x4 - core index']
  #allocation1 [shape = 'u32[144,128]{1,0:T(1,128)}', space=vmem, size = 0x12000, scoped, tag = 'internal scratch']
  %s0 = inlined_call_operand.vmem [shape: f32[2,24,8], index: 0, kind: input, shape index: {}]
  %s1 = inlined_call_operand.vmem [shape: f32[2,8,24], index: 1, kind: input, shape index: {}]
  %s2 = inlined_call_operand.vmem [shape: f32[2,24,1], index: 2, kind: input, shape index: {}]
  %s3 = inlined_call_operand.vmem [shape: f32[2,1,24], index: 3, kind: input, shape index: {}]
  %s4 = inlined_call_operand.vmem [shape: f32[1,16], index: 4, kind: input, shape index: {}]
  %s5 = inlined_call_operand.vmem [shape: bf16[16,32], index: 5, kind: input, shape index: {}]
  %s6 = inlined_call_operand.vmem [shape: f32[1,32], index: 6, kind: input, shape index: {}]
  %s7 = inlined_call_operand.vmem [shape: bf16[32,32], index: 7, kind: input, shape index: {}]
  %s8 = inlined_call_operand.vmem [shape: f32[1,32], index: 8, kind: input, shape index: {}]
  %s9 = inlined_call_operand.vmem [shape: bf16[32,32], index: 9, kind: input, shape index: {}]
  %s10 = inlined_call_operand.vmem [shape: f32[1,32], index: 10, kind: input, shape index: {}]
  %s11 = inlined_call_operand.vmem [shape: f32[1,32], index: 11, kind: input, shape index: {}]
  %s12 = inlined_call_operand.vmem [shape: f32[1,32], index: 12, kind: input, shape index: {}]
  %s13 = inlined_call_operand.hbm [shape: bf16[2,24,24,32], index: 13, kind: output, shape index: {}]
  %s14 = sld [smem:[#allocation0]]
  $region85: #{tpu_custom_call.1} parent=0
    _
  %s16 = ssub.s32 1, %s14
  %s17 = scalar_select 0, %s16, %s14
  $region1: #{tpu_custom_call.1} parent=0
    #allocation2 [shape = 'u8[98304]{0}', space=vmem, size = 0x18000, scoped, tag = 'output window, operand 0']
    #allocation3 [shape = 's32[2]{0}', space=sflag, size = 0x8, scoped, tag = 'scoped memory for tpu_custom_call.1']
    %18 = vsyncpa [#allocation3], 0
    %s19 = scalar_lea.sflag [#allocation3], 1
    %20 = vsyncpa %s19, 0
    loop: start=0, step=1, limit=8
    $region2: #{tpu_custom_call.1} parent=1 // loop_pre_header
      _
    $region3: #{tpu_custom_call.1} parent=1 // loop_header
      %s22 = sphi 0, %s26
      %p23 = scmp.ge.s32.totalorder %s22, 8
      %s29 = sphi 0, %s48
      %s30 = sphi 0, %s44
      %s31 = sphi 0, %s40
      %s32 = sphi 0, %s29
      %s33 = sphi 0, %s30
      %s34 = sphi 0, %s31
      %s35 = sphi 0, %s32
      %s36 = sphi 0, %s33
      %s37 = sphi 0, %s34
      %s53 = sphi 0, %s55
      %s56 = sphi 0, %s53
      %s57 = sphi 0, %s56
      %s73 = sphi 0, %s57
      %s81 = sphi 0, %s83
      %s84 = sphi 0, %s81
      %s85 = sphi 0, %s84
      %s101 = sphi 0, %s85
      %s109 = sphi 0, %s111
      %s112 = sphi 0, %s109
      %s113 = sphi 0, %s112
      %s129 = sphi 0, %s113
      %s137 = sphi 0, %s139
      %s140 = sphi 0, %s137
      %s141 = sphi 0, %s140
      %s157 = sphi 0, %s141
      %s161 = sphi 0, %s161
      %s163 = sphi 0, %s161
      %s164 = sphi 0, %s163
      %s178 = sphi 0, %s164
      %s182 = sphi 0, %s182
      %s184 = sphi 0, %s182
      %s185 = sphi 0, %s184
      %s199 = sphi 0, %s185
      %s203 = sphi 0, %s203
      %s205 = sphi 0, %s203
      %s206 = sphi 0, %s205
      %s220 = sphi 0, %s206
      %s224 = sphi 0, %s224
      %s226 = sphi 0, %s224
      %s227 = sphi 0, %s226
      %s241 = sphi 0, %s227
      %s245 = sphi 0, %s245
      %s247 = sphi 0, %s245
      %s248 = sphi 0, %s247
      %s262 = sphi 0, %s248
      %s266 = sphi 0, %s266
      %s268 = sphi 0, %s266
      %s269 = sphi 0, %s268
      %s283 = sphi 0, %s269
      %s287 = sphi 0, %s287
      %s289 = sphi 0, %s287
      %s290 = sphi 0, %s289
      %s304 = sphi 0, %s290
      %s308 = sphi 0, %s308
      %s310 = sphi 0, %s308
      %s311 = sphi 0, %s310
      %s325 = sphi 0, %s311
      %s329 = sphi 0, %s329
      %s331 = sphi 0, %s329
      %s332 = sphi 0, %s331
      %s346 = sphi 0, %s332
      %s356 = sphi 0, %s358
      %s359 = sphi 0, %s356
      %s360 = sphi 0, %s359
      %s376 = sphi 0, %s360
    $region4: #{tpu_custom_call.1} parent=1 // loop_header_branch
      %25 = sbr.rel (%p23) target = $region8
    $region5: #{tpu_custom_call.1} parent=1 // loop_body
      %s27 = ssub.s32 %s22, 1
      %s28 = ssub.s32 %s22, 2
      %s38 = sadd.s32 1, %s31
      %p39 = scmp.ge.s32.totalorder %s38, 1
      %s40 = scalar_select %p39, 0, %s38
      %s41 = sadd.s32 1, %s30
      %s42 = scalar_select %p39, %s41, %s30
      %p43 = scmp.ge.s32.totalorder %s42, 2
      %s44 = scalar_select %p43, 0, %s42
      %s45 = sadd.s32 1, %s29
      %s46 = scalar_select %p43, %s45, %s29
      %p47 = scmp.ge.s32.totalorder %s46, 3
      %s48 = scalar_select %p47, 0, %s46
      %s49 = ssub.s32 %s30, %s44
      %s50 = ssub.s32 %s29, %s48
      %s51 = sor.u32 %s49, %s50
      %p52 = scmp.eq.s32.totalorder %s51, 0
      %s54 = sadd.s32 %s53, 1
      %s55 = scalar_select %p52, %s53, %s54
      %p58 = pneg %p52
      %p59 = scmp.eq.s32.totalorder %s22, 5
      %p60 = por %p58, %p59
      %p61 = scmp.ne.s32.totalorder %s53, %s56
      %p62 = scmp.eq.s32.totalorder %s22, 0
      %p63 = por %p61, %p62
      %p64 = scmp.ne.s32.totalorder %s53, %s56
      %p65 = scmp.eq.s32.totalorder %s27, 5
      %p66 = por %p64, %p65
      %p67 = scmp.ne.s32.totalorder %s56, %s57
      %p68 = scmp.eq.s32.totalorder %s27, 0
      %p69 = por %p67, %p68
      %p70 = scmp.ne.s32.totalorder %s56, %s57
      %p71 = scmp.eq.s32.totalorder %s28, 5
      %p72 = por %p70, %p71
      %p74 = scmp.ne.s32.totalorder %s57, %s73
      %p75 = scmp.eq.s32.totalorder %s28, 0
      %p76 = por %p74, %p75
      %s77 = ssub.s32 %s30, %s44
      %s78 = ssub.s32 %s31, %s40
      %s79 = sor.u32 %s77, %s78
      %p80 = scmp.eq.s32.totalorder %s79, 0
      %s82 = sadd.s32 %s81, 1
      %s83 = scalar_select %p80, %s81, %s82
      %p86 = pneg %p80
      %p87 = scmp.eq.s32.totalorder %s22, 5
      %p88 = por %p86, %p87
      %p89 = scmp.ne.s32.totalorder %s81, %s84
      %p90 = scmp.eq.s32.totalorder %s22, 0
      %p91 = por %p89, %p90
      %p92 = scmp.ne.s32.totalorder %s81, %s84
      %p93 = scmp.eq.s32.totalorder %s27, 5
      %p94 = por %p92, %p93
      %p95 = scmp.ne.s32.totalorder %s84, %s85
      %p96 = scmp.eq.s32.totalorder %s27, 0
      %p97 = por %p95, %p96
      %p98 = scmp.ne.s32.totalorder %s84, %s85
      %p99 = scmp.eq.s32.totalorder %s28, 5
      %p100 = por %p98, %p99
      %p102 = scmp.ne.s32.totalorder %s85, %s101
      %p103 = scmp.eq.s32.totalorder %s28, 0
      %p104 = por %p102, %p103
      %s105 = ssub.s32 %s30, %s44
      %s106 = ssub.s32 %s29, %s48
      %s107 = sor.u32 %s105, %s106
      %p108 = scmp.eq.s32.totalorder %s107, 0
      %s110 = sadd.s32 %s109, 1
      %s111 = scalar_select %p108, %s109, %s110
      %p114 = pneg %p108
      %p115 = scmp.eq.s32.totalorder %s22, 5
      %p116 = por %p114, %p115
      %p117 = scmp.ne.s32.totalorder %s109, %s112
      %p118 = scmp.eq.s32.totalorder %s22, 0
      %p119 = por %p117, %p118
      %p120 = scmp.ne.s32.totalorder %s109, %s112
      %p121 = scmp.eq.s32.totalorder %s27, 5
      %p122 = por %p120, %p121
      %p123 = scmp.ne.s32.totalorder %s112, %s113
      %p124 = scmp.eq.s32.totalorder %s27, 0
      %p125 = por %p123, %p124
      %p126 = scmp.ne.s32.totalorder %s112, %s113
      %p127 = scmp.eq.s32.totalorder %s28, 5
      %p128 = por %p126, %p127
      %p130 = scmp.ne.s32.totalorder %s113, %s129
      %p131 = scmp.eq.s32.totalorder %s28, 0
      %p132 = por %p130, %p131
      %s133 = ssub.s32 %s30, %s44
      %s134 = ssub.s32 %s31, %s40
      %s135 = sor.u32 %s133, %s134
      %p136 = scmp.eq.s32.totalorder %s135, 0
      %s138 = sadd.s32 %s137, 1
      %s139 = scalar_select %p136, %s137, %s138
      %p142 = pneg %p136
      %p143 = scmp.eq.s32.totalorder %s22, 5
      %p144 = por %p142, %p143
      %p145 = scmp.ne.s32.totalorder %s137, %s140
      %p146 = scmp.eq.s32.totalorder %s22, 0
      %p147 = por %p145, %p146
      %p148 = scmp.ne.s32.totalorder %s137, %s140
      %p149 = scmp.eq.s32.totalorder %s27, 5
      %p150 = por %p148, %p149
      %p151 = scmp.ne.s32.totalorder %s140, %s141
      %p152 = scmp.eq.s32.totalorder %s27, 0
      %p153 = por %p151, %p152
      %p154 = scmp.ne.s32.totalorder %s140, %s141
      %p155 = scmp.eq.s32.totalorder %s28, 5
      %p156 = por %p154, %p155
      %p158 = scmp.ne.s32.totalorder %s141, %s157
      %p159 = scmp.eq.s32.totalorder %s28, 0
      %p160 = por %p158, %p159
      %s162 = sadd.s32 %s161, 1
      %p165 = scmp.eq.s32.totalorder %s22, 5
      %p166 = scmp.ne.s32.totalorder %s161, %s163
      %p167 = scmp.eq.s32.totalorder %s22, 0
      %p168 = por %p166, %p167
      %p169 = scmp.ne.s32.totalorder %s161, %s163
      %p170 = scmp.eq.s32.totalorder %s27, 5
      %p171 = por %p169, %p170
      %p172 = scmp.ne.s32.totalorder %s163, %s164
      %p173 = scmp.eq.s32.totalorder %s27, 0
      %p174 = por %p172, %p173
      %p175 = scmp.ne.s32.totalorder %s163, %s164
      %p176 = scmp.eq.s32.totalorder %s28, 5
      %p177 = por %p175, %p176
      %p179 = scmp.ne.s32.totalorder %s164, %s178
      %p180 = scmp.eq.s32.totalorder %s28, 0
      %p181 = por %p179, %p180
      %s183 = sadd.s32 %s182, 1
      %p186 = scmp.eq.s32.totalorder %s22, 5
      %p187 = scmp.ne.s32.totalorder %s182, %s184
      %p188 = scmp.eq.s32.totalorder %s22, 0
      %p189 = por %p187, %p188
      %p190 = scmp.ne.s32.totalorder %s182, %s184
      %p191 = scmp.eq.s32.totalorder %s27, 5
      %p192 = por %p190, %p191
      %p193 = scmp.ne.s32.totalorder %s184, %s185
      %p194 = scmp.eq.s32.totalorder %s27, 0
      %p195 = por %p193, %p194
      %p196 = scmp.ne.s32.totalorder %s184, %s185
      %p197 = scmp.eq.s32.totalorder %s28, 5
      %p198 = por %p196, %p197
      %p200 = scmp.ne.s32.totalorder %s185, %s199
      %p201 = scmp.eq.s32.totalorder %s28, 0
      %p202 = por %p200, %p201
      %s204 = sadd.s32 %s203, 1
      %p207 = scmp.eq.s32.totalorder %s22, 5
      %p208 = scmp.ne.s32.totalorder %s203, %s205
      %p209 = scmp.eq.s32.totalorder %s22, 0
      %p210 = por %p208, %p209
      %p211 = scmp.ne.s32.totalorder %s203, %s205
      %p212 = scmp.eq.s32.totalorder %s27, 5
      %p213 = por %p211, %p212
      %p214 = scmp.ne.s32.totalorder %s205, %s206
      %p215 = scmp.eq.s32.totalorder %s27, 0
      %p216 = por %p214, %p215
      %p217 = scmp.ne.s32.totalorder %s205, %s206
      %p218 = scmp.eq.s32.totalorder %s28, 5
      %p219 = por %p217, %p218
      %p221 = scmp.ne.s32.totalorder %s206, %s220
      %p222 = scmp.eq.s32.totalorder %s28, 0
      %p223 = por %p221, %p222
      %s225 = sadd.s32 %s224, 1
      %p228 = scmp.eq.s32.totalorder %s22, 5
      %p229 = scmp.ne.s32.totalorder %s224, %s226
      %p230 = scmp.eq.s32.totalorder %s22, 0
      %p231 = por %p229, %p230
      %p232 = scmp.ne.s32.totalorder %s224, %s226
      %p233 = scmp.eq.s32.totalorder %s27, 5
      %p234 = por %p232, %p233
      %p235 = scmp.ne.s32.totalorder %s226, %s227
      %p236 = scmp.eq.s32.totalorder %s27, 0
      %p237 = por %p235, %p236
      %p238 = scmp.ne.s32.totalorder %s226, %s227
      %p239 = scmp.eq.s32.totalorder %s28, 5
      %p240 = por %p238, %p239
      %p242 = scmp.ne.s32.totalorder %s227, %s241
      %p243 = scmp.eq.s32.totalorder %s28, 0
      %p244 = por %p242, %p243
      %s246 = sadd.s32 %s245, 1
      %p249 = scmp.eq.s32.totalorder %s22, 5
      %p250 = scmp.ne.s32.totalorder %s245, %s247
      %p251 = scmp.eq.s32.totalorder %s22, 0
      %p252 = por %p250, %p251
      %p253 = scmp.ne.s32.totalorder %s245, %s247
      %p254 = scmp.eq.s32.totalorder %s27, 5
      %p255 = por %p253, %p254
      %p256 = scmp.ne.s32.totalorder %s247, %s248
      %p257 = scmp.eq.s32.totalorder %s27, 0
      %p258 = por %p256, %p257
      %p259 = scmp.ne.s32.totalorder %s247, %s248
      %p260 = scmp.eq.s32.totalorder %s28, 5
      %p261 = por %p259, %p260
      %p263 = scmp.ne.s32.totalorder %s248, %s262
      %p264 = scmp.eq.s32.totalorder %s28, 0
      %p265 = por %p263, %p264
      %s267 = sadd.s32 %s266, 1
      %p270 = scmp.eq.s32.totalorder %s22, 5
      %p271 = scmp.ne.s32.totalorder %s266, %s268
      %p272 = scmp.eq.s32.totalorder %s22, 0
      %p273 = por %p271, %p272
      %p274 = scmp.ne.s32.totalorder %s266, %s268
      %p275 = scmp.eq.s32.totalorder %s27, 5
      %p276 = por %p274, %p275
      %p277 = scmp.ne.s32.totalorder %s268, %s269
      %p278 = scmp.eq.s32.totalorder %s27, 0
      %p279 = por %p277, %p278
      %p280 = scmp.ne.s32.totalorder %s268, %s269
      %p281 = scmp.eq.s32.totalorder %s28, 5
      %p282 = por %p280, %p281
      %p284 = scmp.ne.s32.totalorder %s269, %s283
      %p285 = scmp.eq.s32.totalorder %s28, 0
      %p286 = por %p284, %p285
      %s288 = sadd.s32 %s287, 1
      %p291 = scmp.eq.s32.totalorder %s22, 5
      %p292 = scmp.ne.s32.totalorder %s287, %s289
      %p293 = scmp.eq.s32.totalorder %s22, 0
      %p294 = por %p292, %p293
      %p295 = scmp.ne.s32.totalorder %s287, %s289
      %p296 = scmp.eq.s32.totalorder %s27, 5
      %p297 = por %p295, %p296
      %p298 = scmp.ne.s32.totalorder %s289, %s290
      %p299 = scmp.eq.s32.totalorder %s27, 0
      %p300 = por %p298, %p299
      %p301 = scmp.ne.s32.totalorder %s289, %s290
      %p302 = scmp.eq.s32.totalorder %s28, 5
      %p303 = por %p301, %p302
      %p305 = scmp.ne.s32.totalorder %s290, %s304
      %p306 = scmp.eq.s32.totalorder %s28, 0
      %p307 = por %p305, %p306
      %s309 = sadd.s32 %s308, 1
      %p312 = scmp.eq.s32.totalorder %s22, 5
      %p313 = scmp.ne.s32.totalorder %s308, %s310
      %p314 = scmp.eq.s32.totalorder %s22, 0
      %p315 = por %p313, %p314
      %p316 = scmp.ne.s32.totalorder %s308, %s310
      %p317 = scmp.eq.s32.totalorder %s27, 5
      %p318 = por %p316, %p317
      %p319 = scmp.ne.s32.totalorder %s310, %s311
      %p320 = scmp.eq.s32.totalorder %s27, 0
      %p321 = por %p319, %p320
      %p322 = scmp.ne.s32.totalorder %s310, %s311
      %p323 = scmp.eq.s32.totalorder %s28, 5
      %p324 = por %p322, %p323
      %p326 = scmp.ne.s32.totalorder %s311, %s325
      %p327 = scmp.eq.s32.totalorder %s28, 0
      %p328 = por %p326, %p327
      %s330 = sadd.s32 %s329, 1
      %p333 = scmp.eq.s32.totalorder %s22, 5
      %p334 = scmp.ne.s32.totalorder %s329, %s331
      %p335 = scmp.eq.s32.totalorder %s22, 0
      %p336 = por %p334, %p335
      %p337 = scmp.ne.s32.totalorder %s329, %s331
      %p338 = scmp.eq.s32.totalorder %s27, 5
      %p339 = por %p337, %p338
      %p340 = scmp.ne.s32.totalorder %s331, %s332
      %p341 = scmp.eq.s32.totalorder %s27, 0
      %p342 = por %p340, %p341
      %p343 = scmp.ne.s32.totalorder %s331, %s332
      %p344 = scmp.eq.s32.totalorder %s28, 5
      %p345 = por %p343, %p344
      %p347 = scmp.ne.s32.totalorder %s332, %s346
      %p348 = scmp.eq.s32.totalorder %s28, 0
      %p349 = por %p347, %p348
      %s350 = ssub.s32 %s30, %s44
      %s351 = ssub.s32 %s29, %s48
      %s352 = sor.u32 %s350, %s351
      %s353 = ssub.s32 %s31, %s40
      %s354 = sor.u32 %s352, %s353
      %p355 = scmp.eq.s32.totalorder %s354, 0
      %s357 = sadd.s32 %s356, 1
      %s358 = scalar_select %p355, %s356, %s357
      %p361 = pneg %p355
      %p362 = scmp.eq.s32.totalorder %s22, 5
      %p363 = por %p361, %p362
      %p364 = scmp.ne.s32.totalorder %s356, %s359
      %p365 = scmp.eq.s32.totalorder %s22, 0
      %p366 = por %p364, %p365
      %p367 = scmp.ne.s32.totalorder %s356, %s359
      %p368 = scmp.eq.s32.totalorder %s27, 5
      %p369 = por %p367, %p368
      %p370 = scmp.ne.s32.totalorder %s359, %s360
      %p371 = scmp.eq.s32.totalorder %s27, 0
      %p372 = por %p370, %p371
      %p373 = scmp.ne.s32.totalorder %s359, %s360
      %p374 = scmp.eq.s32.totalorder %s28, 5
      %p375 = por %p373, %p374
      %p377 = scmp.ne.s32.totalorder %s360, %s376
      %p378 = scmp.eq.s32.totalorder %s28, 0
      %p379 = por %p377, %p378
      %p380 = scmp.le.s32.totalorder 1, %s22
      %p381 = scmp.lt.s32.totalorder %s22, 7
      %p382 = pnand %p380, %p381
      %p383 = pneg %p382
      // Predicated region
      $region9: #{tpu_custom_call.1} parent=5 // pred_check
        _
      $region10: #{tpu_custom_call.1} parent=5 // pred_check_branch
        %385 = sbr.rel (%p382) target = $region12
      $region11: #{tpu_custom_call.1} parent=5 // pred_region
        %s386 = ssub.s32 %s22, 1
        // Predicated region
        $region13: #{tpu_custom_call.1} parent=11 // pred_check
          %p387 = pneg %p174
        $region14: #{tpu_custom_call.1} parent=11 // pred_check_branch
          %389 = sbr.rel (%p387) target = $region16
        $region15: #{tpu_custom_call.1} parent=11 // pred_region
          _
        $region16: #{tpu_custom_call.1} parent=11 // pred_fallthru
          _
        // Predicated region
        $region17: #{tpu_custom_call.1} parent=11 // pred_check
          %p390 = pneg %p195
        $region18: #{tpu_custom_call.1} parent=11 // pred_check_branch
          %392 = sbr.rel (%p390) target = $region20
        $region19: #{tpu_custom_call.1} parent=11 // pred_region
          _
        $region20: #{tpu_custom_call.1} parent=11 // pred_fallthru
          _
        // Predicated region
        $region21: #{tpu_custom_call.1} parent=11 // pred_check
          %p393 = pneg %p216
        $region22: #{tpu_custom_call.1} parent=11 // pred_check_branch
          %395 = sbr.rel (%p393) target = $region24
        $region23: #{tpu_custom_call.1} parent=11 // pred_region
          _
        $region24: #{tpu_custom_call.1} parent=11 // pred_fallthru
          _
        // Predicated region
        $region25: #{tpu_custom_call.1} parent=11 // pred_check
          %p396 = pneg %p237
        $region26: #{tpu_custom_call.1} parent=11 // pred_check_branch
          %398 = sbr.rel (%p396) target = $region28
        $region27: #{tpu_custom_call.1} parent=11 // pred_region
          _
        $region28: #{tpu_custom_call.1} parent=11 // pred_fallthru
          _
        // Predicated region
        $region29: #{tpu_custom_call.1} parent=11 // pred_check
          %p399 = pneg %p258
        $region30: #{tpu_custom_call.1} parent=11 // pred_check_branch
          %401 = sbr.rel (%p399) target = $region32
        $region31: #{tpu_custom_call.1} parent=11 // pred_region
          _
        $region32: #{tpu_custom_call.1} parent=11 // pred_fallthru
          _
        // Predicated region
        $region33: #{tpu_custom_call.1} parent=11 // pred_check
          %p402 = pneg %p279
        $region34: #{tpu_custom_call.1} parent=11 // pred_check_branch
          %404 = sbr.rel (%p402) target = $region36
        $region35: #{tpu_custom_call.1} parent=11 // pred_region
          _
        $region36: #{tpu_custom_call.1} parent=11 // pred_fallthru
          _
        // Predicated region
        $region37: #{tpu_custom_call.1} parent=11 // pred_check
          %p405 = pneg %p300
        $region38: #{tpu_custom_call.1} parent=11 // pred_check_branch
          %407 = sbr.rel (%p405) target = $region40
        $region39: #{tpu_custom_call.1} parent=11 // pred_region
          _
        $region40: #{tpu_custom_call.1} parent=11 // pred_fallthru
          _
        // Predicated region
        $region41: #{tpu_custom_call.1} parent=11 // pred_check
          %p408 = pneg %p321
        $region42: #{tpu_custom_call.1} parent=11 // pred_check_branch
          %410 = sbr.rel (%p408) target = $region44
        $region43: #{tpu_custom_call.1} parent=11 // pred_region
          _
        $region44: #{tpu_custom_call.1} parent=11 // pred_fallthru
          _
        // Predicated region
        $region45: #{tpu_custom_call.1} parent=11 // pred_check
          %p411 = pneg %p342
        $region46: #{tpu_custom_call.1} parent=11 // pred_check_branch
          %413 = sbr.rel (%p411) target = $region48
        $region47: #{tpu_custom_call.1} parent=11 // pred_region
          _
        $region48: #{tpu_custom_call.1} parent=11 // pred_fallthru
          _
      $region12: #{tpu_custom_call.1} parent=5 // pred_fallthru
        _
      %p414 = scmp.lt.s32.totalorder %s22, 6
      // Predicated region
      $region49: #{tpu_custom_call.1} parent=5 // pred_check
        %p415 = pneg %p414
      $region50: #{tpu_custom_call.1} parent=5 // pred_check_branch
        %417 = sbr.rel (%p415) target = $region52
      $region51: #{tpu_custom_call.1} parent=5 // pred_region
        // Predicated region
        $region53: #{tpu_custom_call.1} parent=51 // pred_check
          %p418 = pneg %p63
        $region54: #{tpu_custom_call.1} parent=51 // pred_check_branch
          %420 = sbr.rel (%p418) target = $region56
        $region55: #{tpu_custom_call.1} parent=51 // pred_region
          %p421 = scmp.lt.s32.totalorder %s30, 1
          %s422 = scalar_select %p421, %s30, 1
          %p423 = scmp.lt.s32.totalorder %s29, 2
          %s424 = scalar_select %p423, %s29, 2
          %s425 = smul.addr %s422, 3
          %s426 = sadd.s32 %s424, %s425
          %s427 = smul.addr %s426, 8
          %s428 = scalar_lea.vmem %s0, %s427
        $region56: #{tpu_custom_call.1} parent=51 // pred_fallthru
          _
        // Predicated region
        $region57: #{tpu_custom_call.1} parent=51 // pred_check
          %p429 = pneg %p91
        $region58: #{tpu_custom_call.1} parent=51 // pred_check_branch
          %431 = sbr.rel (%p429) target = $region60
        $region59: #{tpu_custom_call.1} parent=51 // pred_region
          %p432 = scmp.lt.s32.totalorder %s30, 1
          %s433 = scalar_select %p432, %s30, 1
          %p434 = scmp.lt.s32.totalorder %s31, 0
          %s435 = scalar_select %p434, %s31, 0
          %s436 = sadd.s32 %s435, %s433
          %s437 = smul.addr %s436, 8
          %s438 = scalar_lea.vmem %s1, %s437
        $region60: #{tpu_custom_call.1} parent=51 // pred_fallthru
          _
        // Predicated region
        $region61: #{tpu_custom_call.1} parent=51 // pred_check
          %p439 = pneg %p119
        $region62: #{tpu_custom_call.1} parent=51 // pred_check_branch
          %441 = sbr.rel (%p439) target = $region64
        $region63: #{tpu_custom_call.1} parent=51 // pred_region
          %p442 = scmp.lt.s32.totalorder %s30, 1
          %s443 = scalar_select %p442, %s30, 1
          %p444 = scmp.lt.s32.totalorder %s29, 2
          %s445 = scalar_select %p444, %s29, 2
          %s446 = smul.addr %s443, 3
          %s447 = sadd.s32 %s445, %s446
          %s448 = smul.addr %s447, 8
          %s449 = scalar_lea.vmem %s2, %s448
        $region64: #{tpu_custom_call.1} parent=51 // pred_fallthru
          _
        // Predicated region
        $region65: #{tpu_custom_call.1} parent=51 // pred_check
          %p450 = pneg %p147
        $region66: #{tpu_custom_call.1} parent=51 // pred_check_branch
          %452 = sbr.rel (%p450) target = $region68
        $region67: #{tpu_custom_call.1} parent=51 // pred_region
          %p453 = scmp.lt.s32.totalorder %s30, 1
          %s454 = scalar_select %p453, %s30, 1
          %p455 = scmp.lt.s32.totalorder %s31, 0
          %s456 = scalar_select %p455, %s31, 0
          %s457 = sadd.s32 %s456, %s454
          %s458 = scalar_lea.vmem %s3, %s457
        $region68: #{tpu_custom_call.1} parent=51 // pred_fallthru
          _
      $region52: #{tpu_custom_call.1} parent=5 // pred_fallthru
        _
      %p459 = scmp.le.s32.totalorder 1, %s22
      %p460 = scmp.lt.s32.totalorder %s22, 7
      %p461 = pnand %p459, %p460
      %p462 = pneg %p461
      // Predicated region
      $region69: #{tpu_custom_call.1} parent=5 // pred_check
        _
      $region70: #{tpu_custom_call.1} parent=5 // pred_check_branch
        %464 = sbr.rel (%p461) target = $region72
      $region71: #{tpu_custom_call.1} parent=5 // pred_region
        %s465 = ssub.s32 %s22, 1
        %p466 = scmp.lt.s32.totalorder %s33, 1
        %s467 = scalar_select %p466, %s33, 1
        %p468 = scmp.lt.s32.totalorder %s32, 2
        %s469 = scalar_select %p468, %s32, 2
        %s470 = smul.addr %s467, 3
        %s471 = sadd.s32 %s469, %s470
        %s472 = smul.addr %s471, 8
        %s473 = scalar_lea.vmem %s0, %s472
        %p474 = pneg %p69
        %p475 = pneg %p66
        %p476 = scmp.lt.s32.totalorder %s33, 1
        %s477 = scalar_select %p476, %s33, 1
        %p478 = scmp.lt.s32.totalorder %s34, 0
        %s479 = scalar_select %p478, %s34, 0
        %s480 = sadd.s32 %s479, %s477
        %s481 = smul.addr %s480, 8
        %s482 = scalar_lea.vmem %s1, %s481
        %p483 = pneg %p97
        %p484 = pneg %p94
        %p485 = scmp.lt.s32.totalorder %s33, 1
        %s486 = scalar_select %p485, %s33, 1
        %p487 = scmp.lt.s32.totalorder %s32, 2
        %s488 = scalar_select %p487, %s32, 2
        %s489 = smul.addr %s486, 3
        %s490 = sadd.s32 %s488, %s489
        %s491 = smul.addr %s490, 8
        %s492 = scalar_lea.vmem %s2, %s491
        %p493 = pneg %p125
        %p494 = pneg %p122
        %p495 = scmp.lt.s32.totalorder %s33, 1
        %s496 = scalar_select %p495, %s33, 1
        %p497 = scmp.lt.s32.totalorder %s34, 0
        %s498 = scalar_select %p497, %s34, 0
        %s499 = sadd.s32 %s498, %s496
        %s500 = scalar_lea.vmem %s3, %s499
        %p501 = pneg %p153
        %p502 = pneg %p150
        %p503 = pneg %p174
        %p504 = pneg %p171
        %p505 = pneg %p195
        %p506 = pneg %p192
        %p507 = pneg %p216
        %p508 = pneg %p213
        %p509 = pneg %p237
        %p510 = pneg %p234
        %p511 = pneg %p258
        %p512 = pneg %p255
        %p513 = pneg %p279
        %p514 = pneg %p276
        %p515 = pneg %p300
        %p516 = pneg %p297
        %p517 = pneg %p321
        %p518 = pneg %p318
        %p519 = pneg %p342
        %p520 = pneg %p339
        %p521 = pneg %p372
        %p522 = pneg %p369
        %s523 = sand.u32 %s359, 1
        %s524 = scalar_lea.sflag [#allocation3], %s523
        %s525 = sand.u32 %s359, 1
        %s526 = smul.addr %s525, 96
        %s527 = scalar_lea.vmem [#allocation2], %s526
        %p528 = scmp.lt.s32.totalorder %s33, 1
        %s529 = scalar_select %p528, %s33, 1
        %p530 = scmp.lt.s32.totalorder %s32, 2
        %s531 = scalar_select %p530, %s32, 2
        %s532 = smul.addr %s529, 3
        %s533 = sadd.s32 %s531, %s532
        %s534 = smul.addr %s533, 8
        %s535 = scalar_lea.vmem %s0, %s534
        %p536 = scmp.lt.s32.totalorder %s33, 1
        %s537 = scalar_select %p536, %s33, 1
        %p538 = scmp.lt.s32.totalorder %s34, 0
        %s539 = scalar_select %p538, %s34, 0
        %s540 = sadd.s32 %s539, %s537
        %s541 = smul.addr %s540, 8
        %s542 = scalar_lea.vmem %s1, %s541
        %p543 = scmp.lt.s32.totalorder %s33, 1
        %s544 = scalar_select %p543, %s33, 1
        %p545 = scmp.lt.s32.totalorder %s32, 2
        %s546 = scalar_select %p545, %s32, 2
        %s547 = smul.addr %s544, 3
        %s548 = sadd.s32 %s546, %s547
        %s549 = smul.addr %s548, 8
        %s550 = scalar_lea.vmem %s2, %s549
        %p551 = scmp.lt.s32.totalorder %s33, 1
        %s552 = scalar_select %p551, %s33, 1
        %p553 = scmp.lt.s32.totalorder %s34, 0
        %s554 = scalar_select %p553, %s34, 0
        %s555 = sadd.s32 %s554, %s552
        %s556 = scalar_lea.vmem %s3, %s555
        %s557 = smul.u32 8, %s32
        %s558 = smul.u32 3, %s34
        %v560 = vld [vmem:[%s535] sm:$0xff]
        %v561 = vld [vmem:[%s542] sm:$0xff]
        %v562 = vld [vmem:[%s550] sm:$0xff]
        %v563 = vld [vmem:[%s556] sm:$0x1]
        %565 = vset.pattern.permute.xlu0 0
        %566 = vperm.xlu0 %565, %v562
        %v567 = vpop.permute.xlu0 %566
        %v570 = vlaneseq
        %v571 = vshrl.u32 %v570, 7
        %v572 = vsub.s32 0, %v571
        %v573 = vrot.slane %v563, %v572
        %v575 = vmul.f32 %v567, %v573
        %vm576 = vcmask 64512
        %v578 = vsel %vm576, %v560, 0
        %580 = vmatprep.subr.mxu0 0.0
        %581 = vmatpush1.msra.mxu0 0.0
        %582 = vmatprep.subr.mxu0 0.0
        %583 = vmatpush1.msra.mxu0 0.0
        %584 = vmatprep.subr.mxu0 0.0
        %585 = vmatpush1.msra.mxu0 0.0
        %586 = vmatprep.subr.mxu0 0.0
        %587 = vmatpush1.msra.mxu0 0.0
        %588 = vmatprep.subr.mxu0 0.0
        %589 = vmatpush1.msra.mxu0 0.0
        %590 = vmatprep.subr.mxu0 0.0
        %591 = vmatpush1.msra.mxu0 0.0
        %592 = vmatprep.subr.mxu0 0.0
        %593 = vmatpush1.msra.mxu0 0.0
        %594 = vmatprep.subr.mxu0 0.0
        %595 = vmatpush1.msra.mxu0 0.0
        %596 = vmatprep.subr.mxu0 0.0
        %597 = vmatpush1.msra.mxu0 0.0
        %598 = vmatprep.subr.mxu0 0.0
        %599 = vmatpush1.msra.mxu0 0.0
        %600 = vmatprep.subr.mxu0 0.0
        %601 = vmatpush1.msra.mxu0 0.0
        %602 = vmatprep.subr.mxu0 0.0
        %603 = vmatpush1.msra.mxu0 0.0
        %604 = vmatprep.subr.mxu0 0.0
        %605 = vmatpush1.msra.mxu0 0.0
        %606 = vmatprep.subr.mxu0 0.0
        %607 = vmatpush1.msra.mxu0 0.0
        %608 = vmatprep.subr.mxu0 0.0
        %609 = vmatpush1.msra.mxu0 0.0
        %610 = vmatprep.subr.mxu0 0.0
        %611 = vmatpush1.msra.mxu0 %v561
        %612 = vmatprep.subr.mxu0 0.0
        %613 = vmatpush2.msra.mxu0 0.0
        %614 = vmatprep.subr.mxu0 0.0
        %615 = vmatpush2.msra.mxu0 0.0
        %616 = vmatprep.subr.mxu0 0.0
        %617 = vmatpush2.msra.mxu0 0.0
        %618 = vmatprep.subr.mxu0 0.0
        %619 = vmatpush2.msra.mxu0 0.0
        %620 = vmatprep.subr.mxu0 0.0
        %621 = vmatpush2.msra.mxu0 0.0
        %622 = vmatprep.subr.mxu0 0.0
        %623 = vmatpush2.msra.mxu0 0.0
        %624 = vmatprep.subr.mxu0 0.0
        %625 = vmatpush2.msra.mxu0 0.0
        %626 = vmatprep.subr.mxu0 0.0
        %627 = vmatpush2.msra.mxu0 0.0
        %628 = vmatprep.subr.mxu0 0.0
        %629 = vmatpush2.msra.mxu0 0.0
        %630 = vmatprep.subr.mxu0 0.0
        %631 = vmatpush2.msra.mxu0 0.0
        %632 = vmatprep.subr.mxu0 0.0
        %633 = vmatpush2.msra.mxu0 0.0
        %634 = vmatprep.subr.mxu0 0.0
        %635 = vmatpush2.msra.mxu0 0.0
        %636 = vmatprep.subr.mxu0 0.0
        %637 = vmatpush2.msra.mxu0 0.0
        %638 = vmatprep.subr.mxu0 0.0
        %639 = vmatpush2.msra.mxu0 0.0
        %640 = vmatprep.subr.mxu0 0.0
        %641 = vmatpush2.msra.mxu0 0.0
        %642 = vmatprep.subr.mxu0 0.0
        %643 = vmatpush2.msra.mxu0 0.0
        %644 = vmatprep.mubr.f32.mxu0 0.0
        %645 = vmatmul.mubr.f32.gmra.mxu0 %v578
        %v646 = vpop.f32.mrf.mxu0
        %v647 = vadd.f32 0.0, %v646
        %v648 = vpop.f32.mrf.mxu0
        %649 = vdwg.mxu0
        %v650 = vmul.f32 %v560, %v560
        %v651 = vsel %vm576, %v650, 0.0
        %652 = vadd.xlane.f32.xlu0 %v651
        %v653 = vpop.xlane.xlu0 %652
        %v654 = vmul.f32 %v561, %v561
        %vm655 = vcmask 195584
        %v656 = vsel %vm655, %v654, 0.0
        %v657 = vrot.slane %v656, 4
        %v658 = vadd.f32 %v656, %v657
        %v659 = vrot.slane %v658, 2
        %v660 = vadd.f32 %v658, %v659
        %v661 = vrot.slane %v660, 1
        %v662 = vadd.f32 %v660, %v661
        %v663 = vadd.f32 %v653, %v662
        %v664 = vmul.f32 %v647, 2.0
        %v665 = vsub.f32 %v663, %v664
        %v666 = vmax.f32 %v665, 0.0
        %v667 = vadd.f32 %v666, 1e-10
        %v668 = vrsqrt.pop %v667
        %v669 = vmul.f32 %v667, %v668
        %vm670 = vcmp.eq.f32.partialorder %v667, inf
        %v671 = vsel %vm670, %v667, %v669
        %vm672 = vcmp.eq.f32.partialorder %v667, 0.0
        %v673 = vand.u32 %v667, 2147483648
        %v674 = vsel %vm672, %v673, %v671
        %v675 = vmul.f32 %v674, %v575
        %v676 = vld [vmem:[%s4] sm:$0x1]
        %v677 = vlaneseq
        %v678 = vshrl.u32 %v677, 7
        %v679 = vsub.s32 0, %v678
        %v680 = vrot.slane %v675, %v679
        %682 = vbcast.lane.b32.xlu0 %v680, 256
        %v683 = vpop.permute.xlu0 %682
        %s685 = sor.u32 256, 8
        %686 = vbcast.lane.b32.xlu0 %v680, %s685
        %v687 = vpop.permute.xlu0 %686
        %s689 = sor.u32 256, 16
        %690 = vbcast.lane.b32.xlu0 %v680, %s689
        %v691 = vpop.permute.xlu0 %690
        %v692 = vlaneseq
        %v693 = vshrl.u32 %v692, 7
        %v694 = vsub.s32 1, %v693
        %v695 = vrot.slane %v675, %v694
        %697 = vbcast.lane.b32.xlu0 %v695, 256
        %v698 = vpop.permute.xlu0 %697
        %s700 = sor.u32 256, 8
        %701 = vbcast.lane.b32.xlu0 %v695, %s700
        %v702 = vpop.permute.xlu0 %701
        %s704 = sor.u32 256, 16
        %705 = vbcast.lane.b32.xlu0 %v695, %s704
        %v706 = vpop.permute.xlu0 %705
        %v707 = vlaneseq
        %v708 = vshrl.u32 %v707, 7
        %v709 = vsub.s32 2, %v708
        %v710 = vrot.slane %v675, %v709
        %712 = vbcast.lane.b32.xlu0 %v710, 256
        %v713 = vpop.permute.xlu0 %712
        %s715 = sor.u32 256, 8
        %716 = vbcast.lane.b32.xlu0 %v710, %s715
        %v717 = vpop.permute.xlu0 %716
        %s719 = sor.u32 256, 16
        %720 = vbcast.lane.b32.xlu0 %v710, %s719
        %v721 = vpop.permute.xlu0 %720
        %v722 = vlaneseq
        %v723 = vshrl.u32 %v722, 7
        %v724 = vsub.s32 3, %v723
        %v725 = vrot.slane %v675, %v724
        %727 = vbcast.lane.b32.xlu0 %v725, 256
        %v728 = vpop.permute.xlu0 %727
        %s730 = sor.u32 256, 8
        %731 = vbcast.lane.b32.xlu0 %v725, %s730
        %v732 = vpop.permute.xlu0 %731
        %s734 = sor.u32 256, 16
        %735 = vbcast.lane.b32.xlu0 %v725, %s734
        %v736 = vpop.permute.xlu0 %735
        %v737 = vlaneseq
        %v738 = vshrl.u32 %v737, 7
        %v739 = vsub.s32 4, %v738
        %v740 = vrot.slane %v675, %v739
        %742 = vbcast.lane.b32.xlu0 %v740, 256
        %v743 = vpop.permute.xlu0 %742
        %s745 = sor.u32 256, 8
        %746 = vbcast.lane.b32.xlu0 %v740, %s745
        %v747 = vpop.permute.xlu0 %746
        %s749 = sor.u32 256, 16
        %750 = vbcast.lane.b32.xlu0 %v740, %s749
        %v751 = vpop.permute.xlu0 %750
        %v752 = vlaneseq
        %v753 = vshrl.u32 %v752, 7
        %v754 = vsub.s32 5, %v753
        %v755 = vrot.slane %v675, %v754
        %757 = vbcast.lane.b32.xlu0 %v755, 256
        %v758 = vpop.permute.xlu0 %757
        %s760 = sor.u32 256, 8
        %761 = vbcast.lane.b32.xlu0 %v755, %s760
        %v762 = vpop.permute.xlu0 %761
        %s764 = sor.u32 256, 16
        %765 = vbcast.lane.b32.xlu0 %v755, %s764
        %v766 = vpop.permute.xlu0 %765
        %v767 = vlaneseq
        %v768 = vshrl.u32 %v767, 7
        %v769 = vsub.s32 6, %v768
        %v770 = vrot.slane %v675, %v769
        %772 = vbcast.lane.b32.xlu0 %v770, 256
        %v773 = vpop.permute.xlu0 %772
        %s775 = sor.u32 256, 8
        %776 = vbcast.lane.b32.xlu0 %v770, %s775
        %v777 = vpop.permute.xlu0 %776
        %s779 = sor.u32 256, 16
        %780 = vbcast.lane.b32.xlu0 %v770, %s779
        %v781 = vpop.permute.xlu0 %780
        %v782 = vlaneseq
        %v783 = vshrl.u32 %v782, 7
        %v784 = vsub.s32 7, %v783
        %v785 = vrot.slane %v675, %v784
        %787 = vbcast.lane.b32.xlu0 %v785, 256
        %v788 = vpop.permute.xlu0 %787
        %s790 = sor.u32 256, 8
        %791 = vbcast.lane.b32.xlu0 %v785, %s790
        %v792 = vpop.permute.xlu0 %791
        %s794 = sor.u32 256, 16
        %795 = vbcast.lane.b32.xlu0 %v785, %s794
        %v796 = vpop.permute.xlu0 %795
        %v798 = vlaneseq
        %v799 = vshrl.u32 %v798, 7
        %v800 = vsub.s32 0, %v799
        %v801 = vrot.slane %v676, %v800
        %v803 = vsub.f32 %v683, %v801
        %v804 = vsub.f32 %v687, %v801
        %v805 = vsub.f32 %v691, %v801
        %v806 = vsub.f32 %v698, %v801
        %v807 = vsub.f32 %v702, %v801
        %v808 = vsub.f32 %v706, %v801
        %v809 = vsub.f32 %v713, %v801
        %v810 = vsub.f32 %v717, %v801
        %v811 = vsub.f32 %v721, %v801
        %v812 = vsub.f32 %v728, %v801
        %v813 = vsub.f32 %v732, %v801
        %v814 = vsub.f32 %v736, %v801
        %v815 = vsub.f32 %v743, %v801
        %v816 = vsub.f32 %v747, %v801
        %v817 = vsub.f32 %v751, %v801
        %v818 = vsub.f32 %v758, %v801
        %v819 = vsub.f32 %v762, %v801
        %v820 = vsub.f32 %v766, %v801
        %v821 = vsub.f32 %v773, %v801
        %v822 = vsub.f32 %v777, %v801
        %v823 = vsub.f32 %v781, %v801
        %v824 = vsub.f32 %v788, %v801
        %v825 = vsub.f32 %v792, %v801
        %v826 = vsub.f32 %v796, %v801
        %v827 = vmul.f32 %v803, 0.8
        %v828 = vmul.f32 %v804, 0.8
        %v829 = vmul.f32 %v805, 0.8
        %v830 = vmul.f32 %v806, 0.8
        %v831 = vmul.f32 %v807, 0.8
        %v832 = vmul.f32 %v808, 0.8
        %v833 = vmul.f32 %v809, 0.8
        %v834 = vmul.f32 %v810, 0.8
        %v835 = vmul.f32 %v811, 0.8
        %v836 = vmul.f32 %v812, 0.8
        %v837 = vmul.f32 %v813, 0.8
        %v838 = vmul.f32 %v814, 0.8
        %v839 = vmul.f32 %v815, 0.8
        %v840 = vmul.f32 %v816, 0.8
        %v841 = vmul.f32 %v817, 0.8
        %v842 = vmul.f32 %v818, 0.8
        %v843 = vmul.f32 %v819, 0.8
        %v844 = vmul.f32 %v820, 0.8
        %v845 = vmul.f32 %v821, 0.8
        %v846 = vmul.f32 %v822, 0.8
        %v847 = vmul.f32 %v823, 0.8
        %v848 = vmul.f32 %v824, 0.8
        %v849 = vmul.f32 %v825, 0.8
        %v850 = vmul.f32 %v826, 0.8
        %v851 = vmul.f32 %v827, %v827
        %v852 = vmul.f32 %v828, %v828
        %v853 = vmul.f32 %v829, %v829
        %v854 = vmul.f32 %v830, %v830
        %v855 = vmul.f32 %v831, %v831
        %v856 = vmul.f32 %v832, %v832
        %v857 = vmul.f32 %v833, %v833
        %v858 = vmul.f32 %v834, %v834
        %v859 = vmul.f32 %v835, %v835
        %v860 = vmul.f32 %v836, %v836
        %v861 = vmul.f32 %v837, %v837
        %v862 = vmul.f32 %v838, %v838
        %v863 = vmul.f32 %v839, %v839
        %v864 = vmul.f32 %v840, %v840
        %v865 = vmul.f32 %v841, %v841
        %v866 = vmul.f32 %v842, %v842
        %v867 = vmul.f32 %v843, %v843
        %v868 = vmul.f32 %v844, %v844
        %v869 = vmul.f32 %v845, %v845
        %v870 = vmul.f32 %v846, %v846
        %v871 = vmul.f32 %v847, %v847
        %v872 = vmul.f32 %v848, %v848
        %v873 = vmul.f32 %v849, %v849
        %v874 = vmul.f32 %v850, %v850
        %v875 = vsub.f32 0.0, %v851
        %v876 = vsub.f32 0.0, %v852
        %v877 = vsub.f32 0.0, %v853
        %v878 = vsub.f32 0.0, %v854
        %v879 = vsub.f32 0.0, %v855
        %v880 = vsub.f32 0.0, %v856
        %v881 = vsub.f32 0.0, %v857
        %v882 = vsub.f32 0.0, %v858
        %v883 = vsub.f32 0.0, %v859
        %v884 = vsub.f32 0.0, %v860
        %v885 = vsub.f32 0.0, %v861
        %v886 = vsub.f32 0.0, %v862
        %v887 = vsub.f32 0.0, %v863
        %v888 = vsub.f32 0.0, %v864
        %v889 = vsub.f32 0.0, %v865
        %v890 = vsub.f32 0.0, %v866
        %v891 = vsub.f32 0.0, %v867
        %v892 = vsub.f32 0.0, %v868
        %v893 = vsub.f32 0.0, %v869
        %v894 = vsub.f32 0.0, %v870
        %v895 = vsub.f32 0.0, %v871
        %v896 = vsub.f32 0.0, %v872
        %v897 = vsub.f32 0.0, %v873
        %v898 = vsub.f32 0.0, %v874
        %v899 = vmul.f32 %v875, 1.442695
        %v900 = vpow.pop %v899
        %v901 = vmul.f32 %v876, 1.442695
        %v902 = vpow.pop %v901
        %v903 = vmul.f32 %v877, 1.442695
        %v904 = vpow.pop %v903
        %v905 = vmul.f32 %v878, 1.442695
        %v906 = vpow.pop %v905
        %v907 = vmul.f32 %v879, 1.442695
        %v908 = vpow.pop %v907
        %v909 = vmul.f32 %v880, 1.442695
        %v910 = vpow.pop %v909
        %v911 = vmul.f32 %v881, 1.442695
        %v912 = vpow.pop %v911
        %v913 = vmul.f32 %v882, 1.442695
        %v914 = vpow.pop %v913
        %v915 = vmul.f32 %v883, 1.442695
        %v916 = vpow.pop %v915
        %v917 = vmul.f32 %v884, 1.442695
        %v918 = vpow.pop %v917
        %v919 = vmul.f32 %v885, 1.442695
        %v920 = vpow.pop %v919
        %v921 = vmul.f32 %v886, 1.442695
        %v922 = vpow.pop %v921
        %v923 = vmul.f32 %v887, 1.442695
        %v924 = vpow.pop %v923
        %v925 = vmul.f32 %v888, 1.442695
        %v926 = vpow.pop %v925
        %v927 = vmul.f32 %v889, 1.442695
        %v928 = vpow.pop %v927
        %v929 = vmul.f32 %v890, 1.442695
        %v930 = vpow.pop %v929
        %v931 = vmul.f32 %v891, 1.442695
        %v932 = vpow.pop %v931
        %v933 = vmul.f32 %v892, 1.442695
        %v934 = vpow.pop %v933
        %v935 = vmul.f32 %v893, 1.442695
        %v936 = vpow.pop %v935
        %v937 = vmul.f32 %v894, 1.442695
        %v938 = vpow.pop %v937
        %v939 = vmul.f32 %v895, 1.442695
        %v940 = vpow.pop %v939
        %v941 = vmul.f32 %v896, 1.442695
        %v942 = vpow.pop %v941
        %v943 = vmul.f32 %v897, 1.442695
        %v944 = vpow.pop %v943
        %v945 = vmul.f32 %v898, 1.442695
        %v946 = vpow.pop %v945
        %v947 = vlaneseq
        %v948 = vshrl.u32 %v947, 7
        %v949 = vsub.s32 0, %v948
        %v950 = vrot.slane %v575, %v949
        %952 = vbcast.lane.b32.xlu0 %v950, 256
        %v953 = vpop.permute.xlu0 %952
        %s955 = sor.u32 256, 8
        %956 = vbcast.lane.b32.xlu0 %v950, %s955
        %v957 = vpop.permute.xlu0 %956
        %s959 = sor.u32 256, 16
        %960 = vbcast.lane.b32.xlu0 %v950, %s959
        %v961 = vpop.permute.xlu0 %960
        %v962 = vlaneseq
        %v963 = vshrl.u32 %v962, 7
        %v964 = vsub.s32 1, %v963
        %v965 = vrot.slane %v575, %v964
        %967 = vbcast.lane.b32.xlu0 %v965, 256
        %v968 = vpop.permute.xlu0 %967
        %s970 = sor.u32 256, 8
        %971 = vbcast.lane.b32.xlu0 %v965, %s970
        %v972 = vpop.permute.xlu0 %971
        %s974 = sor.u32 256, 16
        %975 = vbcast.lane.b32.xlu0 %v965, %s974
        %v976 = vpop.permute.xlu0 %975
        %v977 = vlaneseq
        %v978 = vshrl.u32 %v977, 7
        %v979 = vsub.s32 2, %v978
        %v980 = vrot.slane %v575, %v979
        %982 = vbcast.lane.b32.xlu0 %v980, 256
        %v983 = vpop.permute.xlu0 %982
        %s985 = sor.u32 256, 8
        %986 = vbcast.lane.b32.xlu0 %v980, %s985
        %v987 = vpop.permute.xlu0 %986
        %s989 = sor.u32 256, 16
        %990 = vbcast.lane.b32.xlu0 %v980, %s989
        %v991 = vpop.permute.xlu0 %990
        %v992 = vlaneseq
        %v993 = vshrl.u32 %v992, 7
        %v994 = vsub.s32 3, %v993
        %v995 = vrot.slane %v575, %v994
        %997 = vbcast.lane.b32.xlu0 %v995, 256
        %v998 = vpop.permute.xlu0 %997
        %s1000 = sor.u32 256, 8
        %1001 = vbcast.lane.b32.xlu0 %v995, %s1000
        %v1002 = vpop.permute.xlu0 %1001
        %s1004 = sor.u32 256, 16
        %1005 = vbcast.lane.b32.xlu0 %v995, %s1004
        %v1006 = vpop.permute.xlu0 %1005
        %v1007 = vlaneseq
        %v1008 = vshrl.u32 %v1007, 7
        %v1009 = vsub.s32 4, %v1008
        %v1010 = vrot.slane %v575, %v1009
        %1012 = vbcast.lane.b32.xlu0 %v1010, 256
        %v1013 = vpop.permute.xlu0 %1012
        %s1015 = sor.u32 256, 8
        %1016 = vbcast.lane.b32.xlu0 %v1010, %s1015
        %v1017 = vpop.permute.xlu0 %1016
        %s1019 = sor.u32 256, 16
        %1020 = vbcast.lane.b32.xlu0 %v1010, %s1019
        %v1021 = vpop.permute.xlu0 %1020
        %v1022 = vlaneseq
        %v1023 = vshrl.u32 %v1022, 7
        %v1024 = vsub.s32 5, %v1023
        %v1025 = vrot.slane %v575, %v1024
        %1027 = vbcast.lane.b32.xlu0 %v1025, 256
        %v1028 = vpop.permute.xlu0 %1027
        %s1030 = sor.u32 256, 8
        %1031 = vbcast.lane.b32.xlu0 %v1025, %s1030
        %v1032 = vpop.permute.xlu0 %1031
        %s1034 = sor.u32 256, 16
        %1035 = vbcast.lane.b32.xlu0 %v1025, %s1034
        %v1036 = vpop.permute.xlu0 %1035
        %v1037 = vlaneseq
        %v1038 = vshrl.u32 %v1037, 7
        %v1039 = vsub.s32 6, %v1038
        %v1040 = vrot.slane %v575, %v1039
        %1042 = vbcast.lane.b32.xlu0 %v1040, 256
        %v1043 = vpop.permute.xlu0 %1042
        %s1045 = sor.u32 256, 8
        %1046 = vbcast.lane.b32.xlu0 %v1040, %s1045
        %v1047 = vpop.permute.xlu0 %1046
        %s1049 = sor.u32 256, 16
        %1050 = vbcast.lane.b32.xlu0 %v1040, %s1049
        %v1051 = vpop.permute.xlu0 %1050
        %v1052 = vlaneseq
        %v1053 = vshrl.u32 %v1052, 7
        %v1054 = vsub.s32 7, %v1053
        %v1055 = vrot.slane %v575, %v1054
        %1057 = vbcast.lane.b32.xlu0 %v1055, 256
        %v1058 = vpop.permute.xlu0 %1057
        %s1060 = sor.u32 256, 8
        %1061 = vbcast.lane.b32.xlu0 %v1055, %s1060
        %v1062 = vpop.permute.xlu0 %1061
        %s1064 = sor.u32 256, 16
        %1065 = vbcast.lane.b32.xlu0 %v1055, %s1064
        %v1066 = vpop.permute.xlu0 %1065
        %v1067 = vmul.f32 %v900, %v953
        %v1068 = vmul.f32 %v902, %v957
        %v1069 = vmul.f32 %v904, %v961
        %v1070 = vmul.f32 %v906, %v968
        %v1071 = vmul.f32 %v908, %v972
        %v1072 = vmul.f32 %v910, %v976
        %v1073 = vmul.f32 %v912, %v983
        %v1074 = vmul.f32 %v914, %v987
        %v1075 = vmul.f32 %v916, %v991
        %v1076 = vmul.f32 %v918, %v998
        %v1077 = vmul.f32 %v920, %v1002
        %v1078 = vmul.f32 %v922, %v1006
        %v1079 = vmul.f32 %v924, %v1013
        %v1080 = vmul.f32 %v926, %v1017
        %v1081 = vmul.f32 %v928, %v1021
        %v1082 = vmul.f32 %v930, %v1028
        %v1083 = vmul.f32 %v932, %v1032
        %v1084 = vmul.f32 %v934, %v1036
        %v1085 = vmul.f32 %v936, %v1043
        %v1086 = vmul.f32 %v938, %v1047
        %v1087 = vmul.f32 %v940, %v1051
        %v1088 = vmul.f32 %v942, %v1058
        %v1089 = vmul.f32 %v944, %v1062
        %v1090 = vmul.f32 %v946, %v1066
        %v1091 = vpack.c.bf16 %v1068, %v1067
        %v1092 = vpack.c.bf16 %v1070, %v1069
        %v1093 = vpack.c.bf16 %v1072, %v1071
        %v1094 = vpack.c.bf16 %v1074, %v1073
        %v1095 = vpack.c.bf16 %v1076, %v1075
        %v1096 = vpack.c.bf16 %v1078, %v1077
        %v1097 = vpack.c.bf16 %v1080, %v1079
        %v1098 = vpack.c.bf16 %v1082, %v1081
        %v1099 = vpack.c.bf16 %v1084, %v1083
        %v1100 = vpack.c.bf16 %v1086, %v1085
        %v1101 = vpack.c.bf16 %v1088, %v1087
        %v1102 = vpack.c.bf16 %v1090, %v1089
        %v1103 = vld [vmem:[%s5] sm:$0xf]
        %v1104 = vld [vmem:[%s5 + $0x4] sm:$0xf]
        %v1105 = vld [vmem:[%s6] sm:$0x1]
        %v1107 = vlaneseq
        %v1108 = vshrl.u32 %v1107, 7
        %v1109 = vsub.s32 0, %v1108
        %v1110 = vrot.slane %v1105, %v1109
        %v1114 = vunpack.c.l.b16 %v1103
        %v1115 = vunpack.c.l.b16 %v1104
        %v1116 = vpack.c.b16 %v1115, %v1114
        %vm1118 = vcmask 130048
        %v1120 = vsel %vm1118, %v1091, 0
        %v1123 = vsel %vm1118, %v1092, 0
        %v1126 = vsel %vm1118, %v1093, 0
        %v1129 = vsel %vm1118, %v1094, 0
        %v1132 = vsel %vm1118, %v1095, 0
        %v1135 = vsel %vm1118, %v1096, 0
        %v1138 = vsel %vm1118, %v1097, 0
        %v1141 = vsel %vm1118, %v1098, 0
        %v1144 = vsel %vm1118, %v1099, 0
        %v1147 = vsel %vm1118, %v1100, 0
        %v1150 = vsel %vm1118, %v1101, 0
        %v1153 = vsel %vm1118, %v1102, 0
        %1155 = vmatprep.subr.bf16.mxu0 0
        %1156 = vmatpush1.bf16.msra.mxu0 0
        %1157 = vmatprep.subr.bf16.mxu0 0
        %1158 = vmatpush1.bf16.msra.mxu0 0
        %1159 = vmatprep.subr.bf16.mxu0 0
        %1160 = vmatpush1.bf16.msra.mxu0 0
        %1161 = vmatprep.subr.bf16.mxu0 0
        %1162 = vmatpush1.bf16.msra.mxu0 0
        %1163 = vmatprep.subr.bf16.mxu0 0
        %1164 = vmatpush1.bf16.msra.mxu0 0
        %1165 = vmatprep.subr.bf16.mxu0 0
        %1166 = vmatpush1.bf16.msra.mxu0 0
        %1167 = vmatprep.subr.bf16.mxu0 0
        %1168 = vmatpush1.bf16.msra.mxu0 0
        %1169 = vmatprep.subr.bf16.mxu0 0
        %1170 = vmatpush1.bf16.msra.mxu0 %v1116
        %1171 = vmatprep.subr.bf16.mxu0 0
        %1172 = vmatpush2.bf16.msra.mxu0 0
        %1173 = vmatprep.subr.bf16.mxu0 0
        %1174 = vmatpush2.bf16.msra.mxu0 0
        %1175 = vmatprep.subr.bf16.mxu0 0
        %1176 = vmatpush2.bf16.msra.mxu0 0
        %1177 = vmatprep.subr.bf16.mxu0 0
        %1178 = vmatpush2.bf16.msra.mxu0 0
        %1179 = vmatprep.subr.bf16.mxu0 0
        %1180 = vmatpush2.bf16.msra.mxu0 0
        %1181 = vmatprep.subr.bf16.mxu0 0
        %1182 = vmatpush2.bf16.msra.mxu0 0
        %1183 = vmatprep.subr.bf16.mxu0 0
        %1184 = vmatpush2.bf16.msra.mxu0 0
        %1185 = vmatprep.subr.bf16.mxu0 0
        %1186 = vmatpush2.bf16.msra.mxu0 0
        %1187 = vmatprep.mubr.bf16.mxu0 0
        %1188 = vmatmul.mubr.bf16.gmra.mxu0 %v1120
        %v1189 = vpop.f32.mrf.mxu0
        %v1190 = vadd.f32 %v1110, %v1189
        %v1191 = vpop.f32.mrf.mxu0
        %v1192 = vpop.f32.mrf.mxu0
        %v1193 = vadd.f32 %v1110, %v1192
        %v1194 = vpop.f32.mrf.mxu0
        %1195 = vmatprep.mubr.bf16.mxu0 0
        %1196 = vmatmul.mubr.bf16.gmra.mxu0 %v1123
        %v1197 = vpop.f32.mrf.mxu0
        %v1198 = vadd.f32 %v1110, %v1197
        %v1199 = vpop.f32.mrf.mxu0
        %v1200 = vpop.f32.mrf.mxu0
        %v1201 = vadd.f32 %v1110, %v1200
        %v1202 = vpop.f32.mrf.mxu0
        %1203 = vmatprep.mubr.bf16.mxu0 0
        %1204 = vmatmul.mubr.bf16.gmra.mxu0 %v1126
        %v1205 = vpop.f32.mrf.mxu0
        %v1206 = vadd.f32 %v1110, %v1205
        %v1207 = vpop.f32.mrf.mxu0
        %v1208 = vpop.f32.mrf.mxu0
        %v1209 = vadd.f32 %v1110, %v1208
        %v1210 = vpop.f32.mrf.mxu0
        %1211 = vmatprep.mubr.bf16.mxu0 0
        %1212 = vmatmul.mubr.bf16.gmra.mxu0 %v1129
        %v1213 = vpop.f32.mrf.mxu0
        %v1214 = vadd.f32 %v1110, %v1213
        %v1215 = vpop.f32.mrf.mxu0
        %v1216 = vpop.f32.mrf.mxu0
        %v1217 = vadd.f32 %v1110, %v1216
        %v1218 = vpop.f32.mrf.mxu0
        %1219 = vmatprep.mubr.bf16.mxu0 0
        %1220 = vmatmul.mubr.bf16.gmra.mxu0 %v1132
        %v1221 = vpop.f32.mrf.mxu0
        %v1222 = vadd.f32 %v1110, %v1221
        %v1223 = vpop.f32.mrf.mxu0
        %v1224 = vpop.f32.mrf.mxu0
        %v1225 = vadd.f32 %v1110, %v1224
        %v1226 = vpop.f32.mrf.mxu0
        %1227 = vmatprep.mubr.bf16.mxu0 0
        %1228 = vmatmul.mubr.bf16.gmra.mxu0 %v1135
        %v1229 = vpop.f32.mrf.mxu0
        %v1230 = vadd.f32 %v1110, %v1229
        %v1231 = vpop.f32.mrf.mxu0
        %v1232 = vpop.f32.mrf.mxu0
        %v1233 = vadd.f32 %v1110, %v1232
        %v1234 = vpop.f32.mrf.mxu0
        %1235 = vmatprep.mubr.bf16.mxu0 0
        %1236 = vmatmul.mubr.bf16.gmra.mxu0 %v1138
        %v1237 = vpop.f32.mrf.mxu0
        %v1238 = vadd.f32 %v1110, %v1237
        %v1239 = vpop.f32.mrf.mxu0
        %v1240 = vpop.f32.mrf.mxu0
        %v1241 = vadd.f32 %v1110, %v1240
        %v1242 = vpop.f32.mrf.mxu0
        %1243 = vmatprep.mubr.bf16.mxu0 0
        %1244 = vmatmul.mubr.bf16.gmra.mxu0 %v1141
        %v1245 = vpop.f32.mrf.mxu0
        %v1246 = vadd.f32 %v1110, %v1245
        %v1247 = vpop.f32.mrf.mxu0
        %v1248 = vpop.f32.mrf.mxu0
        %v1249 = vadd.f32 %v1110, %v1248
        %v1250 = vpop.f32.mrf.mxu0
        %1251 = vmatprep.mubr.bf16.mxu0 0
        %1252 = vmatmul.mubr.bf16.gmra.mxu0 %v1144
        %v1253 = vpop.f32.mrf.mxu0
        %v1254 = vadd.f32 %v1110, %v1253
        %v1255 = vpop.f32.mrf.mxu0
        %v1256 = vpop.f32.mrf.mxu0
        %v1257 = vadd.f32 %v1110, %v1256
        %v1258 = vpop.f32.mrf.mxu0
        %1259 = vmatprep.mubr.bf16.mxu0 0
        %1260 = vmatmul.mubr.bf16.gmra.mxu0 %v1147
        %v1261 = vpop.f32.mrf.mxu0
        %v1262 = vadd.f32 %v1110, %v1261
        %v1263 = vpop.f32.mrf.mxu0
        %v1264 = vpop.f32.mrf.mxu0
        %v1265 = vadd.f32 %v1110, %v1264
        %v1266 = vpop.f32.mrf.mxu0
        %1267 = vmatprep.mubr.bf16.mxu0 0
        %1268 = vmatmul.mubr.bf16.gmra.mxu0 %v1150
        %v1269 = vpop.f32.mrf.mxu0
        %v1270 = vadd.f32 %v1110, %v1269
        %v1271 = vpop.f32.mrf.mxu0
        %v1272 = vpop.f32.mrf.mxu0
        %v1273 = vadd.f32 %v1110, %v1272
        %v1274 = vpop.f32.mrf.mxu0
        %1275 = vmatprep.mubr.bf16.mxu0 0
        %1276 = vmatmul.mubr.bf16.gmra.mxu0 %v1153
        %v1277 = vpop.f32.mrf.mxu0
        %v1278 = vadd.f32 %v1110, %v1277
        %v1279 = vpop.f32.mrf.mxu0
        %v1280 = vpop.f32.mrf.mxu0
        %v1281 = vadd.f32 %v1110, %v1280
        %v1282 = vpop.f32.mrf.mxu0
        %1283 = vdwg.mxu0
        %v1284 = vmax.f32 %v1190, 0.0
        %v1285 = vmax.f32 %v1193, 0.0
        %v1286 = vmax.f32 %v1198, 0.0
        %v1287 = vmax.f32 %v1201, 0.0
        %v1288 = vmax.f32 %v1206, 0.0
        %v1289 = vmax.f32 %v1209, 0.0
        %v1290 = vmax.f32 %v1214, 0.0
        %v1291 = vmax.f32 %v1217, 0.0
        %v1292 = vmax.f32 %v1222, 0.0
        %v1293 = vmax.f32 %v1225, 0.0
        %v1294 = vmax.f32 %v1230, 0.0
        %v1295 = vmax.f32 %v1233, 0.0
        %v1296 = vmax.f32 %v1238, 0.0
        %v1297 = vmax.f32 %v1241, 0.0
        %v1298 = vmax.f32 %v1246, 0.0
        %v1299 = vmax.f32 %v1249, 0.0
        %v1300 = vmax.f32 %v1254, 0.0
        %v1301 = vmax.f32 %v1257, 0.0
        %v1302 = vmax.f32 %v1262, 0.0
        %v1303 = vmax.f32 %v1265, 0.0
        %v1304 = vmax.f32 %v1270, 0.0
        %v1305 = vmax.f32 %v1273, 0.0
        %v1306 = vmax.f32 %v1278, 0.0
        %v1307 = vmax.f32 %v1281, 0.0
        %v1308 = vpack.c.bf16 %v1285, %v1284
        %v1309 = vpack.c.bf16 %v1287, %v1286
        %v1310 = vpack.c.bf16 %v1289, %v1288
        %v1311 = vpack.c.bf16 %v1291, %v1290
        %v1312 = vpack.c.bf16 %v1293, %v1292
        %v1313 = vpack.c.bf16 %v1295, %v1294
        %v1314 = vpack.c.bf16 %v1297, %v1296
        %v1315 = vpack.c.bf16 %v1299, %v1298
        %v1316 = vpack.c.bf16 %v1301, %v1300
        %v1317 = vpack.c.bf16 %v1303, %v1302
        %v1318 = vpack.c.bf16 %v1305, %v1304
        %v1319 = vpack.c.bf16 %v1307, %v1306
        %v1320 = vld [vmem:[%s7] sm:$0xf]
        %v1321 = vld [vmem:[%s7 + $0x4] sm:$0xf]
        %v1322 = vld [vmem:[%s7 + $0x8] sm:$0xf]
        %v1323 = vld [vmem:[%s7 + $0xc] sm:$0xf]
        %v1324 = vld [vmem:[%s8] sm:$0x1]
        %v1326 = vlaneseq
        %v1327 = vshrl.u32 %v1326, 7
        %v1328 = vsub.s32 0, %v1327
        %v1329 = vrot.slane %v1324, %v1328
        %v1335 = vunpack.c.l.b16 %v1320
        %v1336 = vunpack.c.l.b16 %v1321
        %v1337 = vunpack.c.l.b16 %v1322
        %v1338 = vunpack.c.l.b16 %v1323
        %v1339 = vpack.c.b16 %v1336, %v1335
        %v1340 = vpack.c.b16 %v1338, %v1337
        %vm1343 = vcmask 261120
        %v1345 = vsel %vm1343, %v1308, 0
        %v1348 = vsel %vm1343, %v1309, 0
        %v1351 = vsel %vm1343, %v1310, 0
        %v1354 = vsel %vm1343, %v1311, 0
        %v1357 = vsel %vm1343, %v1312, 0
        %v1360 = vsel %vm1343, %v1313, 0
        %v1363 = vsel %vm1343, %v1314, 0
        %v1366 = vsel %vm1343, %v1315, 0
        %v1369 = vsel %vm1343, %v1316, 0
        %v1372 = vsel %vm1343, %v1317, 0
        %v1375 = vsel %vm1343, %v1318, 0
        %v1378 = vsel %vm1343, %v1319, 0
        %1380 = vmatprep.subr.bf16.mxu0 0
        %1381 = vmatpush1.bf16.msra.mxu0 0
        %1382 = vmatprep.subr.bf16.mxu0 0
        %1383 = vmatpush1.bf16.msra.mxu0 0
        %1384 = vmatprep.subr.bf16.mxu0 0
        %1385 = vmatpush1.bf16.msra.mxu0 0
        %1386 = vmatprep.subr.bf16.mxu0 0
        %1387 = vmatpush1.bf16.msra.mxu0 0
        %1388 = vmatprep.subr.bf16.mxu0 0
        %1389 = vmatpush1.bf16.msra.mxu0 0
        %1390 = vmatprep.subr.bf16.mxu0 0
        %1391 = vmatpush1.bf16.msra.mxu0 0
        %1392 = vmatprep.subr.bf16.mxu0 0
        %1393 = vmatpush1.bf16.msra.mxu0 %v1340
        %1394 = vmatprep.subr.bf16.mxu0 0
        %1395 = vmatpush1.bf16.msra.mxu0 %v1339
        %1396 = vmatprep.subr.bf16.mxu0 0
        %1397 = vmatpush2.bf16.msra.mxu0 0
        %1398 = vmatprep.subr.bf16.mxu0 0
        %1399 = vmatpush2.bf16.msra.mxu0 0
        %1400 = vmatprep.subr.bf16.mxu0 0
        %1401 = vmatpush2.bf16.msra.mxu0 0
        %1402 = vmatprep.subr.bf16.mxu0 0
        %1403 = vmatpush2.bf16.msra.mxu0 0
        %1404 = vmatprep.subr.bf16.mxu0 0
        %1405 = vmatpush2.bf16.msra.mxu0 0
        %1406 = vmatprep.subr.bf16.mxu0 0
        %1407 = vmatpush2.bf16.msra.mxu0 0
        %1408 = vmatprep.subr.bf16.mxu0 0
        %1409 = vmatpush2.bf16.msra.mxu0 0
        %1410 = vmatprep.subr.bf16.mxu0 0
        %1411 = vmatpush2.bf16.msra.mxu0 0
        %1412 = vmatprep.mubr.bf16.mxu0 0
        %1413 = vmatmul.mubr.bf16.gmra.mxu0 %v1345
        %v1414 = vpop.f32.mrf.mxu0
        %v1415 = vadd.f32 %v1329, %v1414
        %v1416 = vpop.f32.mrf.mxu0
        %v1417 = vpop.f32.mrf.mxu0
        %v1418 = vadd.f32 %v1329, %v1417
        %v1419 = vpop.f32.mrf.mxu0
        %1420 = vmatprep.mubr.bf16.mxu0 0
        %1421 = vmatmul.mubr.bf16.gmra.mxu0 %v1348
        %v1422 = vpop.f32.mrf.mxu0
        %v1423 = vadd.f32 %v1329, %v1422
        %v1424 = vpop.f32.mrf.mxu0
        %v1425 = vpop.f32.mrf.mxu0
        %v1426 = vadd.f32 %v1329, %v1425
        %v1427 = vpop.f32.mrf.mxu0
        %1428 = vmatprep.mubr.bf16.mxu0 0
        %1429 = vmatmul.mubr.bf16.gmra.mxu0 %v1351
        %v1430 = vpop.f32.mrf.mxu0
        %v1431 = vadd.f32 %v1329, %v1430
        %v1432 = vpop.f32.mrf.mxu0
        %v1433 = vpop.f32.mrf.mxu0
        %v1434 = vadd.f32 %v1329, %v1433
        %v1435 = vpop.f32.mrf.mxu0
        %1436 = vmatprep.mubr.bf16.mxu0 0
        %1437 = vmatmul.mubr.bf16.gmra.mxu0 %v1354
        %v1438 = vpop.f32.mrf.mxu0
        %v1439 = vadd.f32 %v1329, %v1438
        %v1440 = vpop.f32.mrf.mxu0
        %v1441 = vpop.f32.mrf.mxu0
        %v1442 = vadd.f32 %v1329, %v1441
        %v1443 = vpop.f32.mrf.mxu0
        %1444 = vmatprep.mubr.bf16.mxu0 0
        %1445 = vmatmul.mubr.bf16.gmra.mxu0 %v1357
        %v1446 = vpop.f32.mrf.mxu0
        %v1447 = vadd.f32 %v1329, %v1446
        %v1448 = vpop.f32.mrf.mxu0
        %v1449 = vpop.f32.mrf.mxu0
        %v1450 = vadd.f32 %v1329, %v1449
        %v1451 = vpop.f32.mrf.mxu0
        %1452 = vmatprep.mubr.bf16.mxu0 0
        %1453 = vmatmul.mubr.bf16.gmra.mxu0 %v1360
        %v1454 = vpop.f32.mrf.mxu0
        %v1455 = vadd.f32 %v1329, %v1454
        %v1456 = vpop.f32.mrf.mxu0
        %v1457 = vpop.f32.mrf.mxu0
        %v1458 = vadd.f32 %v1329, %v1457
        %v1459 = vpop.f32.mrf.mxu0
        %1460 = vmatprep.mubr.bf16.mxu0 0
        %1461 = vmatmul.mubr.bf16.gmra.mxu0 %v1363
        %v1462 = vpop.f32.mrf.mxu0
        %v1463 = vadd.f32 %v1329, %v1462
        %v1464 = vpop.f32.mrf.mxu0
        %v1465 = vpop.f32.mrf.mxu0
        %v1466 = vadd.f32 %v1329, %v1465
        %v1467 = vpop.f32.mrf.mxu0
        %1468 = vmatprep.mubr.bf16.mxu0 0
        %1469 = vmatmul.mubr.bf16.gmra.mxu0 %v1366
        %v1470 = vpop.f32.mrf.mxu0
        %v1471 = vadd.f32 %v1329, %v1470
        %v1472 = vpop.f32.mrf.mxu0
        %v1473 = vpop.f32.mrf.mxu0
        %v1474 = vadd.f32 %v1329, %v1473
        %v1475 = vpop.f32.mrf.mxu0
        %1476 = vmatprep.mubr.bf16.mxu0 0
        %1477 = vmatmul.mubr.bf16.gmra.mxu0 %v1369
        %v1478 = vpop.f32.mrf.mxu0
        %v1479 = vadd.f32 %v1329, %v1478
        %v1480 = vpop.f32.mrf.mxu0
        %v1481 = vpop.f32.mrf.mxu0
        %v1482 = vadd.f32 %v1329, %v1481
        %v1483 = vpop.f32.mrf.mxu0
        %1484 = vmatprep.mubr.bf16.mxu0 0
        %1485 = vmatmul.mubr.bf16.gmra.mxu0 %v1372
        %v1486 = vpop.f32.mrf.mxu0
        %v1487 = vadd.f32 %v1329, %v1486
        %v1488 = vpop.f32.mrf.mxu0
        %v1489 = vpop.f32.mrf.mxu0
        %v1490 = vadd.f32 %v1329, %v1489
        %v1491 = vpop.f32.mrf.mxu0
        %1492 = vmatprep.mubr.bf16.mxu0 0
        %1493 = vmatmul.mubr.bf16.gmra.mxu0 %v1375
        %v1494 = vpop.f32.mrf.mxu0
        %v1495 = vadd.f32 %v1329, %v1494
        %v1496 = vpop.f32.mrf.mxu0
        %v1497 = vpop.f32.mrf.mxu0
        %v1498 = vadd.f32 %v1329, %v1497
        %v1499 = vpop.f32.mrf.mxu0
        %1500 = vmatprep.mubr.bf16.mxu0 0
        %1501 = vmatmul.mubr.bf16.gmra.mxu0 %v1378
        %v1502 = vpop.f32.mrf.mxu0
        %v1503 = vadd.f32 %v1329, %v1502
        %v1504 = vpop.f32.mrf.mxu0
        %v1505 = vpop.f32.mrf.mxu0
        %v1506 = vadd.f32 %v1329, %v1505
        %v1507 = vpop.f32.mrf.mxu0
        %1508 = vdwg.mxu0
        %v1509 = vmax.f32 %v1415, 0.0
        %v1510 = vmax.f32 %v1418, 0.0
        %v1511 = vmax.f32 %v1423, 0.0
        %v1512 = vmax.f32 %v1426, 0.0
        %v1513 = vmax.f32 %v1431, 0.0
        %v1514 = vmax.f32 %v1434, 0.0
        %v1515 = vmax.f32 %v1439, 0.0
        %v1516 = vmax.f32 %v1442, 0.0
        %v1517 = vmax.f32 %v1447, 0.0
        %v1518 = vmax.f32 %v1450, 0.0
        %v1519 = vmax.f32 %v1455, 0.0
        %v1520 = vmax.f32 %v1458, 0.0
        %v1521 = vmax.f32 %v1463, 0.0
        %v1522 = vmax.f32 %v1466, 0.0
        %v1523 = vmax.f32 %v1471, 0.0
        %v1524 = vmax.f32 %v1474, 0.0
        %v1525 = vmax.f32 %v1479, 0.0
        %v1526 = vmax.f32 %v1482, 0.0
        %v1527 = vmax.f32 %v1487, 0.0
        %v1528 = vmax.f32 %v1490, 0.0
        %v1529 = vmax.f32 %v1495, 0.0
        %v1530 = vmax.f32 %v1498, 0.0
        %v1531 = vmax.f32 %v1503, 0.0
        %v1532 = vmax.f32 %v1506, 0.0
        %v1533 = vpack.c.bf16 %v1510, %v1509
        %v1534 = vpack.c.bf16 %v1512, %v1511
        %v1535 = vpack.c.bf16 %v1514, %v1513
        %v1536 = vpack.c.bf16 %v1516, %v1515
        %v1537 = vpack.c.bf16 %v1518, %v1517
        %v1538 = vpack.c.bf16 %v1520, %v1519
        %v1539 = vpack.c.bf16 %v1522, %v1521
        %v1540 = vpack.c.bf16 %v1524, %v1523
        %v1541 = vpack.c.bf16 %v1526, %v1525
        %v1542 = vpack.c.bf16 %v1528, %v1527
        %v1543 = vpack.c.bf16 %v1530, %v1529
        %v1544 = vpack.c.bf16 %v1532, %v1531
        %v1545 = vld [vmem:[%s9] sm:$0xf]
        %v1546 = vld [vmem:[%s9 + $0x4] sm:$0xf]
        %v1547 = vld [vmem:[%s9 + $0x8] sm:$0xf]
        %v1548 = vld [vmem:[%s9 + $0xc] sm:$0xf]
        %v1549 = vld [vmem:[%s10] sm:$0x1]
        %v1551 = vlaneseq
        %v1552 = vshrl.u32 %v1551, 7
        %v1553 = vsub.s32 0, %v1552
        %v1554 = vrot.slane %v1549, %v1553
        %v1560 = vunpack.c.l.b16 %v1545
        %v1561 = vunpack.c.l.b16 %v1546
        %v1562 = vunpack.c.l.b16 %v1547
        %v1563 = vunpack.c.l.b16 %v1548
        %v1564 = vpack.c.b16 %v1561, %v1560
        %v1565 = vpack.c.b16 %v1563, %v1562
        %v1569 = vsel %vm1343, %v1533, 0
        %v1572 = vsel %vm1343, %v1534, 0
        %v1575 = vsel %vm1343, %v1535, 0
        %v1578 = vsel %vm1343, %v1536, 0
        %v1581 = vsel %vm1343, %v1537, 0
        %v1584 = vsel %vm1343, %v1538, 0
        %v1587 = vsel %vm1343, %v1539, 0
        %v1590 = vsel %vm1343, %v1540, 0
        %v1593 = vsel %vm1343, %v1541, 0
        %v1596 = vsel %vm1343, %v1542, 0
        %v1599 = vsel %vm1343, %v1543, 0
        %v1602 = vsel %vm1343, %v1544, 0
        %1604 = vmatprep.subr.bf16.mxu0 0
        %1605 = vmatpush1.bf16.msra.mxu0 0
        %1606 = vmatprep.subr.bf16.mxu0 0
        %1607 = vmatpush1.bf16.msra.mxu0 0
        %1608 = vmatprep.subr.bf16.mxu0 0
        %1609 = vmatpush1.bf16.msra.mxu0 0
        %1610 = vmatprep.subr.bf16.mxu0 0
        %1611 = vmatpush1.bf16.msra.mxu0 0
        %1612 = vmatprep.subr.bf16.mxu0 0
        %1613 = vmatpush1.bf16.msra.mxu0 0
        %1614 = vmatprep.subr.bf16.mxu0 0
        %1615 = vmatpush1.bf16.msra.mxu0 0
        %1616 = vmatprep.subr.bf16.mxu0 0
        %1617 = vmatpush1.bf16.msra.mxu0 %v1565
        %1618 = vmatprep.subr.bf16.mxu0 0
        %1619 = vmatpush1.bf16.msra.mxu0 %v1564
        %1620 = vmatprep.subr.bf16.mxu0 0
        %1621 = vmatpush2.bf16.msra.mxu0 0
        %1622 = vmatprep.subr.bf16.mxu0 0
        %1623 = vmatpush2.bf16.msra.mxu0 0
        %1624 = vmatprep.subr.bf16.mxu0 0
        %1625 = vmatpush2.bf16.msra.mxu0 0
        %1626 = vmatprep.subr.bf16.mxu0 0
        %1627 = vmatpush2.bf16.msra.mxu0 0
        %1628 = vmatprep.subr.bf16.mxu0 0
        %1629 = vmatpush2.bf16.msra.mxu0 0
        %1630 = vmatprep.subr.bf16.mxu0 0
        %1631 = vmatpush2.bf16.msra.mxu0 0
        %1632 = vmatprep.subr.bf16.mxu0 0
        %1633 = vmatpush2.bf16.msra.mxu0 0
        %1634 = vmatprep.subr.bf16.mxu0 0
        %1635 = vmatpush2.bf16.msra.mxu0 0
        %1636 = vmatprep.mubr.bf16.mxu0 0
        %1637 = vmatmul.mubr.bf16.gmra.mxu0 %v1569
        %v1638 = vpop.f32.mrf.mxu0
        %v1639 = vadd.f32 %v1554, %v1638
        %v1640 = vpop.f32.mrf.mxu0
        %v1641 = vpop.f32.mrf.mxu0
        %v1642 = vadd.f32 %v1554, %v1641
        %v1643 = vpop.f32.mrf.mxu0
        %1644 = vmatprep.mubr.bf16.mxu0 0
        %1645 = vmatmul.mubr.bf16.gmra.mxu0 %v1572
        %v1646 = vpop.f32.mrf.mxu0
        %v1647 = vadd.f32 %v1554, %v1646
        %v1648 = vpop.f32.mrf.mxu0
        %v1649 = vpop.f32.mrf.mxu0
        %v1650 = vadd.f32 %v1554, %v1649
        %v1651 = vpop.f32.mrf.mxu0
        %1652 = vmatprep.mubr.bf16.mxu0 0
        %1653 = vmatmul.mubr.bf16.gmra.mxu0 %v1575
        %v1654 = vpop.f32.mrf.mxu0
        %v1655 = vadd.f32 %v1554, %v1654
        %v1656 = vpop.f32.mrf.mxu0
        %v1657 = vpop.f32.mrf.mxu0
        %v1658 = vadd.f32 %v1554, %v1657
        %v1659 = vpop.f32.mrf.mxu0
        %1660 = vmatprep.mubr.bf16.mxu0 0
        %1661 = vmatmul.mubr.bf16.gmra.mxu0 %v1578
        %v1662 = vpop.f32.mrf.mxu0
        %v1663 = vadd.f32 %v1554, %v1662
        %v1664 = vpop.f32.mrf.mxu0
        %v1665 = vpop.f32.mrf.mxu0
        %v1666 = vadd.f32 %v1554, %v1665
        %v1667 = vpop.f32.mrf.mxu0
        %1668 = vmatprep.mubr.bf16.mxu0 0
        %1669 = vmatmul.mubr.bf16.gmra.mxu0 %v1581
        %v1670 = vpop.f32.mrf.mxu0
        %v1671 = vadd.f32 %v1554, %v1670
        %v1672 = vpop.f32.mrf.mxu0
        %v1673 = vpop.f32.mrf.mxu0
        %v1674 = vadd.f32 %v1554, %v1673
        %v1675 = vpop.f32.mrf.mxu0
        %1676 = vmatprep.mubr.bf16.mxu0 0
        %1677 = vmatmul.mubr.bf16.gmra.mxu0 %v1584
        %v1678 = vpop.f32.mrf.mxu0
        %v1679 = vadd.f32 %v1554, %v1678
        %v1680 = vpop.f32.mrf.mxu0
        %v1681 = vpop.f32.mrf.mxu0
        %v1682 = vadd.f32 %v1554, %v1681
        %v1683 = vpop.f32.mrf.mxu0
        %1684 = vmatprep.mubr.bf16.mxu0 0
        %1685 = vmatmul.mubr.bf16.gmra.mxu0 %v1587
        %v1686 = vpop.f32.mrf.mxu0
        %v1687 = vadd.f32 %v1554, %v1686
        %v1688 = vpop.f32.mrf.mxu0
        %v1689 = vpop.f32.mrf.mxu0
        %v1690 = vadd.f32 %v1554, %v1689
        %v1691 = vpop.f32.mrf.mxu0
        %1692 = vmatprep.mubr.bf16.mxu0 0
        %1693 = vmatmul.mubr.bf16.gmra.mxu0 %v1590
        %v1694 = vpop.f32.mrf.mxu0
        %v1695 = vadd.f32 %v1554, %v1694
        %v1696 = vpop.f32.mrf.mxu0
        %v1697 = vpop.f32.mrf.mxu0
        %v1698 = vadd.f32 %v1554, %v1697
        %v1699 = vpop.f32.mrf.mxu0
        %1700 = vmatprep.mubr.bf16.mxu0 0
        %1701 = vmatmul.mubr.bf16.gmra.mxu0 %v1593
        %v1702 = vpop.f32.mrf.mxu0
        %v1703 = vadd.f32 %v1554, %v1702
        %v1704 = vpop.f32.mrf.mxu0
        %v1705 = vpop.f32.mrf.mxu0
        %v1706 = vadd.f32 %v1554, %v1705
        %v1707 = vpop.f32.mrf.mxu0
        %1708 = vmatprep.mubr.bf16.mxu0 0
        %1709 = vmatmul.mubr.bf16.gmra.mxu0 %v1596
        %v1710 = vpop.f32.mrf.mxu0
        %v1711 = vadd.f32 %v1554, %v1710
        %v1712 = vpop.f32.mrf.mxu0
        %v1713 = vpop.f32.mrf.mxu0
        %v1714 = vadd.f32 %v1554, %v1713
        %v1715 = vpop.f32.mrf.mxu0
        %1716 = vmatprep.mubr.bf16.mxu0 0
        %1717 = vmatmul.mubr.bf16.gmra.mxu0 %v1599
        %v1718 = vpop.f32.mrf.mxu0
        %v1719 = vadd.f32 %v1554, %v1718
        %v1720 = vpop.f32.mrf.mxu0
        %v1721 = vpop.f32.mrf.mxu0
        %v1722 = vadd.f32 %v1554, %v1721
        %v1723 = vpop.f32.mrf.mxu0
        %1724 = vmatprep.mubr.bf16.mxu0 0
        %1725 = vmatmul.mubr.bf16.gmra.mxu0 %v1602
        %v1726 = vpop.f32.mrf.mxu0
        %v1727 = vadd.f32 %v1554, %v1726
        %v1728 = vpop.f32.mrf.mxu0
        %v1729 = vpop.f32.mrf.mxu0
        %v1730 = vadd.f32 %v1554, %v1729
        %v1731 = vpop.f32.mrf.mxu0
        %1732 = vdwg.mxu0
        %v1733 = vsel %vm1343, %v1639, 0.0
        %1734 = vadd.xlane.f32.xlu0 %v1733
        %v1735 = vpop.xlane.xlu0 %1734
        %v1736 = vsel %vm1343, %v1642, 0.0
        %1737 = vadd.xlane.f32.xlu0 %v1736
        %v1738 = vpop.xlane.xlu0 %1737
        %v1739 = vsel %vm1343, %v1647, 0.0
        %1740 = vadd.xlane.f32.xlu0 %v1739
        %v1741 = vpop.xlane.xlu0 %1740
        %v1742 = vsel %vm1343, %v1650, 0.0
        %1743 = vadd.xlane.f32.xlu0 %v1742
        %v1744 = vpop.xlane.xlu0 %1743
        %v1745 = vsel %vm1343, %v1655, 0.0
        %1746 = vadd.xlane.f32.xlu0 %v1745
        %v1747 = vpop.xlane.xlu0 %1746
        %v1748 = vsel %vm1343, %v1658, 0.0
        %1749 = vadd.xlane.f32.xlu0 %v1748
        %v1750 = vpop.xlane.xlu0 %1749
        %v1751 = vsel %vm1343, %v1663, 0.0
        %1752 = vadd.xlane.f32.xlu0 %v1751
        %v1753 = vpop.xlane.xlu0 %1752
        %v1754 = vsel %vm1343, %v1666, 0.0
        %1755 = vadd.xlane.f32.xlu0 %v1754
        %v1756 = vpop.xlane.xlu0 %1755
        %v1757 = vsel %vm1343, %v1671, 0.0
        %1758 = vadd.xlane.f32.xlu0 %v1757
        %v1759 = vpop.xlane.xlu0 %1758
        %v1760 = vsel %vm1343, %v1674, 0.0
        %1761 = vadd.xlane.f32.xlu0 %v1760
        %v1762 = vpop.xlane.xlu0 %1761
        %v1763 = vsel %vm1343, %v1679, 0.0
        %1764 = vadd.xlane.f32.xlu0 %v1763
        %v1765 = vpop.xlane.xlu0 %1764
        %v1766 = vsel %vm1343, %v1682, 0.0
        %1767 = vadd.xlane.f32.xlu0 %v1766
        %v1768 = vpop.xlane.xlu0 %1767
        %v1769 = vsel %vm1343, %v1687, 0.0
        %1770 = vadd.xlane.f32.xlu0 %v1769
        %v1771 = vpop.xlane.xlu0 %1770
        %v1772 = vsel %vm1343, %v1690, 0.0
        %1773 = vadd.xlane.f32.xlu0 %v1772
        %v1774 = vpop.xlane.xlu0 %1773
        %v1775 = vsel %vm1343, %v1695, 0.0
        %1776 = vadd.xlane.f32.xlu0 %v1775
        %v1777 = vpop.xlane.xlu0 %1776
        %v1778 = vsel %vm1343, %v1698, 0.0
        %1779 = vadd.xlane.f32.xlu0 %v1778
        %v1780 = vpop.xlane.xlu0 %1779
        %v1781 = vsel %vm1343, %v1703, 0.0
        %1782 = vadd.xlane.f32.xlu0 %v1781
        %v1783 = vpop.xlane.xlu0 %1782
        %v1784 = vsel %vm1343, %v1706, 0.0
        %1785 = vadd.xlane.f32.xlu0 %v1784
        %v1786 = vpop.xlane.xlu0 %1785
        %v1787 = vsel %vm1343, %v1711, 0.0
        %1788 = vadd.xlane.f32.xlu0 %v1787
        %v1789 = vpop.xlane.xlu0 %1788
        %v1790 = vsel %vm1343, %v1714, 0.0
        %1791 = vadd.xlane.f32.xlu0 %v1790
        %v1792 = vpop.xlane.xlu0 %1791
        %v1793 = vsel %vm1343, %v1719, 0.0
        %1794 = vadd.xlane.f32.xlu0 %v1793
        %v1795 = vpop.xlane.xlu0 %1794
        %v1796 = vsel %vm1343, %v1722, 0.0
        %1797 = vadd.xlane.f32.xlu0 %v1796
        %v1798 = vpop.xlane.xlu0 %1797
        %v1799 = vsel %vm1343, %v1727, 0.0
        %1800 = vadd.xlane.f32.xlu0 %v1799
        %v1801 = vpop.xlane.xlu0 %1800
        %v1802 = vsel %vm1343, %v1730, 0.0
        %1803 = vadd.xlane.f32.xlu0 %v1802
        %v1804 = vpop.xlane.xlu0 %1803
        %v1805 = vrcp.pop 32.0
        %v1806 = vmul.f32 %v1735, %v1805
        %v1807 = vmul.f32 %v1738, %v1805
        %v1808 = vmul.f32 %v1741, %v1805
        %v1809 = vmul.f32 %v1744, %v1805
        %v1810 = vmul.f32 %v1747, %v1805
        %v1811 = vmul.f32 %v1750, %v1805
        %v1812 = vmul.f32 %v1753, %v1805
        %v1813 = vmul.f32 %v1756, %v1805
        %v1814 = vmul.f32 %v1759, %v1805
        %v1815 = vmul.f32 %v1762, %v1805
        %v1816 = vmul.f32 %v1765, %v1805
        %v1817 = vmul.f32 %v1768, %v1805
        %v1818 = vmul.f32 %v1771, %v1805
        %v1819 = vmul.f32 %v1774, %v1805
        %v1820 = vmul.f32 %v1777, %v1805
        %v1821 = vmul.f32 %v1780, %v1805
        %v1822 = vmul.f32 %v1783, %v1805
        %v1823 = vmul.f32 %v1786, %v1805
        %v1824 = vmul.f32 %v1789, %v1805
        %v1825 = vmul.f32 %v1792, %v1805
        %v1826 = vmul.f32 %v1795, %v1805
        %v1827 = vmul.f32 %v1798, %v1805
        %v1828 = vmul.f32 %v1801, %v1805
        %v1829 = vmul.f32 %v1804, %v1805
        %v1830 = vsub.f32 %v1639, %v1806
        %v1831 = vsub.f32 %v1642, %v1807
        %v1832 = vsub.f32 %v1647, %v1808
        %v1833 = vsub.f32 %v1650, %v1809
        %v1834 = vsub.f32 %v1655, %v1810
        %v1835 = vsub.f32 %v1658, %v1811
        %v1836 = vsub.f32 %v1663, %v1812
        %v1837 = vsub.f32 %v1666, %v1813
        %v1838 = vsub.f32 %v1671, %v1814
        %v1839 = vsub.f32 %v1674, %v1815
        %v1840 = vsub.f32 %v1679, %v1816
        %v1841 = vsub.f32 %v1682, %v1817
        %v1842 = vsub.f32 %v1687, %v1818
        %v1843 = vsub.f32 %v1690, %v1819
        %v1844 = vsub.f32 %v1695, %v1820
        %v1845 = vsub.f32 %v1698, %v1821
        %v1846 = vsub.f32 %v1703, %v1822
        %v1847 = vsub.f32 %v1706, %v1823
        %v1848 = vsub.f32 %v1711, %v1824
        %v1849 = vsub.f32 %v1714, %v1825
        %v1850 = vsub.f32 %v1719, %v1826
        %v1851 = vsub.f32 %v1722, %v1827
        %v1852 = vsub.f32 %v1727, %v1828
        %v1853 = vsub.f32 %v1730, %v1829
        %v1854 = vmul.f32 %v1830, %v1830
        %v1855 = vmul.f32 %v1831, %v1831
        %v1856 = vmul.f32 %v1832, %v1832
        %v1857 = vmul.f32 %v1833, %v1833
        %v1858 = vmul.f32 %v1834, %v1834
        %v1859 = vmul.f32 %v1835, %v1835
        %v1860 = vmul.f32 %v1836, %v1836
        %v1861 = vmul.f32 %v1837, %v1837
        %v1862 = vmul.f32 %v1838, %v1838
        %v1863 = vmul.f32 %v1839, %v1839
        %v1864 = vmul.f32 %v1840, %v1840
        %v1865 = vmul.f32 %v1841, %v1841
        %v1866 = vmul.f32 %v1842, %v1842
        %v1867 = vmul.f32 %v1843, %v1843
        %v1868 = vmul.f32 %v1844, %v1844
        %v1869 = vmul.f32 %v1845, %v1845
        %v1870 = vmul.f32 %v1846, %v1846
        %v1871 = vmul.f32 %v1847, %v1847
        %v1872 = vmul.f32 %v1848, %v1848
        %v1873 = vmul.f32 %v1849, %v1849
        %v1874 = vmul.f32 %v1850, %v1850
        %v1875 = vmul.f32 %v1851, %v1851
        %v1876 = vmul.f32 %v1852, %v1852
        %v1877 = vmul.f32 %v1853, %v1853
        %v1878 = vsel %vm1343, %v1854, 0.0
        %1879 = vadd.xlane.f32.xlu0 %v1878
        %v1880 = vpop.xlane.xlu0 %1879
        %v1881 = vsel %vm1343, %v1855, 0.0
        %1882 = vadd.xlane.f32.xlu0 %v1881
        %v1883 = vpop.xlane.xlu0 %1882
        %v1884 = vsel %vm1343, %v1856, 0.0
        %1885 = vadd.xlane.f32.xlu0 %v1884
        %v1886 = vpop.xlane.xlu0 %1885
        %v1887 = vsel %vm1343, %v1857, 0.0
        %1888 = vadd.xlane.f32.xlu0 %v1887
        %v1889 = vpop.xlane.xlu0 %1888
        %v1890 = vsel %vm1343, %v1858, 0.0
        %1891 = vadd.xlane.f32.xlu0 %v1890
        %v1892 = vpop.xlane.xlu0 %1891
        %v1893 = vsel %vm1343, %v1859, 0.0
        %1894 = vadd.xlane.f32.xlu0 %v1893
        %v1895 = vpop.xlane.xlu0 %1894
        %v1896 = vsel %vm1343, %v1860, 0.0
        %1897 = vadd.xlane.f32.xlu0 %v1896
        %v1898 = vpop.xlane.xlu0 %1897
        %v1899 = vsel %vm1343, %v1861, 0.0
        %1900 = vadd.xlane.f32.xlu0 %v1899
        %v1901 = vpop.xlane.xlu0 %1900
        %v1902 = vsel %vm1343, %v1862, 0.0
        %1903 = vadd.xlane.f32.xlu0 %v1902
        %v1904 = vpop.xlane.xlu0 %1903
        %v1905 = vsel %vm1343, %v1863, 0.0
        %1906 = vadd.xlane.f32.xlu0 %v1905
        %v1907 = vpop.xlane.xlu0 %1906
        %v1908 = vsel %vm1343, %v1864, 0.0
        %1909 = vadd.xlane.f32.xlu0 %v1908
        %v1910 = vpop.xlane.xlu0 %1909
        %v1911 = vsel %vm1343, %v1865, 0.0
        %1912 = vadd.xlane.f32.xlu0 %v1911
        %v1913 = vpop.xlane.xlu0 %1912
        %v1914 = vsel %vm1343, %v1866, 0.0
        %1915 = vadd.xlane.f32.xlu0 %v1914
        %v1916 = vpop.xlane.xlu0 %1915
        %v1917 = vsel %vm1343, %v1867, 0.0
        %1918 = vadd.xlane.f32.xlu0 %v1917
        %v1919 = vpop.xlane.xlu0 %1918
        %v1920 = vsel %vm1343, %v1868, 0.0
        %1921 = vadd.xlane.f32.xlu0 %v1920
        %v1922 = vpop.xlane.xlu0 %1921
        %v1923 = vsel %vm1343, %v1869, 0.0
        %1924 = vadd.xlane.f32.xlu0 %v1923
        %v1925 = vpop.xlane.xlu0 %1924
        %v1926 = vsel %vm1343, %v1870, 0.0
        %1927 = vadd.xlane.f32.xlu0 %v1926
        %v1928 = vpop.xlane.xlu0 %1927
        %v1929 = vsel %vm1343, %v1871, 0.0
        %1930 = vadd.xlane.f32.xlu0 %v1929
        %v1931 = vpop.xlane.xlu0 %1930
        %v1932 = vsel %vm1343, %v1872, 0.0
        %1933 = vadd.xlane.f32.xlu0 %v1932
        %v1934 = vpop.xlane.xlu0 %1933
        %v1935 = vsel %vm1343, %v1873, 0.0
        %1936 = vadd.xlane.f32.xlu0 %v1935
        %v1937 = vpop.xlane.xlu0 %1936
        %v1938 = vsel %vm1343, %v1874, 0.0
        %1939 = vadd.xlane.f32.xlu0 %v1938
        %v1940 = vpop.xlane.xlu0 %1939
        %v1941 = vsel %vm1343, %v1875, 0.0
        %1942 = vadd.xlane.f32.xlu0 %v1941
        %v1943 = vpop.xlane.xlu0 %1942
        %v1944 = vsel %vm1343, %v1876, 0.0
        %1945 = vadd.xlane.f32.xlu0 %v1944
        %v1946 = vpop.xlane.xlu0 %1945
        %v1947 = vsel %vm1343, %v1877, 0.0
        %1948 = vadd.xlane.f32.xlu0 %v1947
        %v1949 = vpop.xlane.xlu0 %1948
        %v1950 = vmul.f32 %v1880, %v1805
        %v1951 = vmul.f32 %v1883, %v1805
        %v1952 = vmul.f32 %v1886, %v1805
        %v1953 = vmul.f32 %v1889, %v1805
        %v1954 = vmul.f32 %v1892, %v1805
        %v1955 = vmul.f32 %v1895, %v1805
        %v1956 = vmul.f32 %v1898, %v1805
        %v1957 = vmul.f32 %v1901, %v1805
        %v1958 = vmul.f32 %v1904, %v1805
        %v1959 = vmul.f32 %v1907, %v1805
        %v1960 = vmul.f32 %v1910, %v1805
        %v1961 = vmul.f32 %v1913, %v1805
        %v1962 = vmul.f32 %v1916, %v1805
        %v1963 = vmul.f32 %v1919, %v1805
        %v1964 = vmul.f32 %v1922, %v1805
        %v1965 = vmul.f32 %v1925, %v1805
        %v1966 = vmul.f32 %v1928, %v1805
        %v1967 = vmul.f32 %v1931, %v1805
        %v1968 = vmul.f32 %v1934, %v1805
        %v1969 = vmul.f32 %v1937, %v1805
        %v1970 = vmul.f32 %v1940, %v1805
        %v1971 = vmul.f32 %v1943, %v1805
        %v1972 = vmul.f32 %v1946, %v1805
        %v1973 = vmul.f32 %v1949, %v1805
        %v1974 = vadd.f32 %v1950, 1e-05
        %v1975 = vadd.f32 %v1951, 1e-05
        %v1976 = vadd.f32 %v1952, 1e-05
        %v1977 = vadd.f32 %v1953, 1e-05
        %v1978 = vadd.f32 %v1954, 1e-05
        %v1979 = vadd.f32 %v1955, 1e-05
        %v1980 = vadd.f32 %v1956, 1e-05
        %v1981 = vadd.f32 %v1957, 1e-05
        %v1982 = vadd.f32 %v1958, 1e-05
        %v1983 = vadd.f32 %v1959, 1e-05
        %v1984 = vadd.f32 %v1960, 1e-05
        %v1985 = vadd.f32 %v1961, 1e-05
        %v1986 = vadd.f32 %v1962, 1e-05
        %v1987 = vadd.f32 %v1963, 1e-05
        %v1988 = vadd.f32 %v1964, 1e-05
        %v1989 = vadd.f32 %v1965, 1e-05
        %v1990 = vadd.f32 %v1966, 1e-05
        %v1991 = vadd.f32 %v1967, 1e-05
        %v1992 = vadd.f32 %v1968, 1e-05
        %v1993 = vadd.f32 %v1969, 1e-05
        %v1994 = vadd.f32 %v1970, 1e-05
        %v1995 = vadd.f32 %v1971, 1e-05
        %v1996 = vadd.f32 %v1972, 1e-05
        %v1997 = vadd.f32 %v1973, 1e-05
        %v1998 = vrsqrt.pop %v1974
        %v1999 = vrsqrt.pop %v1975
        %v2000 = vrsqrt.pop %v1976
        %v2001 = vrsqrt.pop %v1977
        %v2002 = vrsqrt.pop %v1978
        %v2003 = vrsqrt.pop %v1979
        %v2004 = vrsqrt.pop %v1980
        %v2005 = vrsqrt.pop %v1981
        %v2006 = vrsqrt.pop %v1982
        %v2007 = vrsqrt.pop %v1983
        %v2008 = vrsqrt.pop %v1984
        %v2009 = vrsqrt.pop %v1985
        %v2010 = vrsqrt.pop %v1986
        %v2011 = vrsqrt.pop %v1987
        %v2012 = vrsqrt.pop %v1988
        %v2013 = vrsqrt.pop %v1989
        %v2014 = vrsqrt.pop %v1990
        %v2015 = vrsqrt.pop %v1991
        %v2016 = vrsqrt.pop %v1992
        %v2017 = vrsqrt.pop %v1993
        %v2018 = vrsqrt.pop %v1994
        %v2019 = vrsqrt.pop %v1995
        %v2020 = vrsqrt.pop %v1996
        %v2021 = vrsqrt.pop %v1997
        %v2022 = vmul.f32 %v1830, %v1998
        %v2023 = vmul.f32 %v1831, %v1999
        %v2024 = vmul.f32 %v1832, %v2000
        %v2025 = vmul.f32 %v1833, %v2001
        %v2026 = vmul.f32 %v1834, %v2002
        %v2027 = vmul.f32 %v1835, %v2003
        %v2028 = vmul.f32 %v1836, %v2004
        %v2029 = vmul.f32 %v1837, %v2005
        %v2030 = vmul.f32 %v1838, %v2006
        %v2031 = vmul.f32 %v1839, %v2007
        %v2032 = vmul.f32 %v1840, %v2008
        %v2033 = vmul.f32 %v1841, %v2009
        %v2034 = vmul.f32 %v1842, %v2010
        %v2035 = vmul.f32 %v1843, %v2011
        %v2036 = vmul.f32 %v1844, %v2012
        %v2037 = vmul.f32 %v1845, %v2013
        %v2038 = vmul.f32 %v1846, %v2014
        %v2039 = vmul.f32 %v1847, %v2015
        %v2040 = vmul.f32 %v1848, %v2016
        %v2041 = vmul.f32 %v1849, %v2017
        %v2042 = vmul.f32 %v1850, %v2018
        %v2043 = vmul.f32 %v1851, %v2019
        %v2044 = vmul.f32 %v1852, %v2020
        %v2045 = vmul.f32 %v1853, %v2021
        %v2046 = vld [vmem:[%s11] sm:$0x1]
        %v2048 = vlaneseq
        %v2049 = vshrl.u32 %v2048, 7
        %v2050 = vsub.s32 0, %v2049
        %v2051 = vrot.slane %v2046, %v2050
        %v2053 = vmul.f32 %v2022, %v2051
        %v2054 = vmul.f32 %v2023, %v2051
        %v2055 = vmul.f32 %v2024, %v2051
        %v2056 = vmul.f32 %v2025, %v2051
        %v2057 = vmul.f32 %v2026, %v2051
        %v2058 = vmul.f32 %v2027, %v2051
        %v2059 = vmul.f32 %v2028, %v2051
        %v2060 = vmul.f32 %v2029, %v2051
        %v2061 = vmul.f32 %v2030, %v2051
        %v2062 = vmul.f32 %v2031, %v2051
        %v2063 = vmul.f32 %v2032, %v2051
        %v2064 = vmul.f32 %v2033, %v2051
        %v2065 = vmul.f32 %v2034, %v2051
        %v2066 = vmul.f32 %v2035, %v2051
        %v2067 = vmul.f32 %v2036, %v2051
        %v2068 = vmul.f32 %v2037, %v2051
        %v2069 = vmul.f32 %v2038, %v2051
        %v2070 = vmul.f32 %v2039, %v2051
        %v2071 = vmul.f32 %v2040, %v2051
        %v2072 = vmul.f32 %v2041, %v2051
        %v2073 = vmul.f32 %v2042, %v2051
        %v2074 = vmul.f32 %v2043, %v2051
        %v2075 = vmul.f32 %v2044, %v2051
        %v2076 = vmul.f32 %v2045, %v2051
        %v2077 = vld [vmem:[%s12] sm:$0x1]
        %v2079 = vlaneseq
        %v2080 = vshrl.u32 %v2079, 7
        %v2081 = vsub.s32 0, %v2080
        %v2082 = vrot.slane %v2077, %v2081
        %v2084 = vadd.f32 %v2053, %v2082
        %v2085 = vadd.f32 %v2054, %v2082
        %v2086 = vadd.f32 %v2055, %v2082
        %v2087 = vadd.f32 %v2056, %v2082
        %v2088 = vadd.f32 %v2057, %v2082
        %v2089 = vadd.f32 %v2058, %v2082
        %v2090 = vadd.f32 %v2059, %v2082
        %v2091 = vadd.f32 %v2060, %v2082
        %v2092 = vadd.f32 %v2061, %v2082
        %v2093 = vadd.f32 %v2062, %v2082
        %v2094 = vadd.f32 %v2063, %v2082
        %v2095 = vadd.f32 %v2064, %v2082
        %v2096 = vadd.f32 %v2065, %v2082
        %v2097 = vadd.f32 %v2066, %v2082
        %v2098 = vadd.f32 %v2067, %v2082
        %v2099 = vadd.f32 %v2068, %v2082
        %v2100 = vadd.f32 %v2069, %v2082
        %v2101 = vadd.f32 %v2070, %v2082
        %v2102 = vadd.f32 %v2071, %v2082
        %v2103 = vadd.f32 %v2072, %v2082
        %v2104 = vadd.f32 %v2073, %v2082
        %v2105 = vadd.f32 %v2074, %v2082
        %v2106 = vadd.f32 %v2075, %v2082
        %v2107 = vadd.f32 %v2076, %v2082
        %v2108 = vpack.c.bf16 %v2085, %v2084
        %v2109 = vpack.c.bf16 %v2086, %v2086
        %v2110 = vpack.c.bf16 %v2088, %v2087
        %v2111 = vpack.c.bf16 %v2089, %v2089
        %v2112 = vpack.c.bf16 %v2091, %v2090
        %v2113 = vpack.c.bf16 %v2092, %v2092
        %v2114 = vpack.c.bf16 %v2094, %v2093
        %v2115 = vpack.c.bf16 %v2095, %v2095
        %v2116 = vpack.c.bf16 %v2097, %v2096
        %v2117 = vpack.c.bf16 %v2098, %v2098
        %v2118 = vpack.c.bf16 %v2100, %v2099
        %v2119 = vpack.c.bf16 %v2101, %v2101
        %v2120 = vpack.c.bf16 %v2103, %v2102
        %v2121 = vpack.c.bf16 %v2104, %v2104
        %v2122 = vpack.c.bf16 %v2106, %v2105
        %v2123 = vpack.c.bf16 %v2107, %v2107
        %v2140 = vunpack.c.l.b16 %v2108
        %v2141 = vunpack.c.h.b16 %v2108
        %v2142 = vunpack.c.l.b16 %v2109
        %v2143 = vunpack.c.l.b16 %v2110
        %v2144 = vunpack.c.h.b16 %v2110
        %v2145 = vunpack.c.l.b16 %v2111
        %v2146 = vunpack.c.l.b16 %v2112
        %v2147 = vunpack.c.h.b16 %v2112
        %v2148 = vunpack.c.l.b16 %v2113
        %v2149 = vunpack.c.l.b16 %v2114
        %v2150 = vunpack.c.h.b16 %v2114
        %v2151 = vunpack.c.l.b16 %v2115
        %v2152 = vunpack.c.l.b16 %v2116
        %v2153 = vunpack.c.h.b16 %v2116
        %v2154 = vunpack.c.l.b16 %v2117
        %v2155 = vunpack.c.l.b16 %v2118
        %v2156 = vunpack.c.h.b16 %v2118
        %v2157 = vunpack.c.l.b16 %v2119
        %v2158 = vunpack.c.l.b16 %v2120
        %v2159 = vunpack.c.h.b16 %v2120
        %v2160 = vunpack.c.l.b16 %v2121
        %v2161 = vunpack.c.l.b16 %v2122
        %v2162 = vunpack.c.h.b16 %v2122
        %v2163 = vunpack.c.l.b16 %v2123
        %v2164 = vpack.c.b16 %v2140, %v2140
        %v2165 = vpack.c.b16 %v2141, %v2141
        %v2166 = vpack.c.b16 %v2142, %v2142
        %v2167 = vpack.c.b16 %v2143, %v2143
        %v2168 = vpack.c.b16 %v2144, %v2144
        %v2169 = vpack.c.b16 %v2145, %v2145
        %v2170 = vpack.c.b16 %v2146, %v2146
        %v2171 = vpack.c.b16 %v2147, %v2147
        %v2172 = vpack.c.b16 %v2148, %v2148
        %v2173 = vpack.c.b16 %v2149, %v2149
        %v2174 = vpack.c.b16 %v2150, %v2150
        %v2175 = vpack.c.b16 %v2151, %v2151
        %v2176 = vpack.c.b16 %v2152, %v2152
        %v2177 = vpack.c.b16 %v2153, %v2153
        %v2178 = vpack.c.b16 %v2154, %v2154
        %v2179 = vpack.c.b16 %v2155, %v2155
        %v2180 = vpack.c.b16 %v2156, %v2156
        %v2181 = vpack.c.b16 %v2157, %v2157
        %v2182 = vpack.c.b16 %v2158, %v2158
        %v2183 = vpack.c.b16 %v2159, %v2159
        %v2184 = vpack.c.b16 %v2160, %v2160
        %v2185 = vpack.c.b16 %v2161, %v2161
        %v2186 = vpack.c.b16 %v2162, %v2162
        %v2187 = vpack.c.b16 %v2163, %v2163
        %vm2212 = vcmask 257024
        %2213 = vst.msk [vmem:[%s527] sm:$0xf] %vm2212, %v2164
        %2214 = vst.msk [vmem:[%s527 + $0x4] sm:$0xf] %vm2212, %v2165
        %2215 = vst.msk [vmem:[%s527 + $0x8] sm:$0xf] %vm2212, %v2166
        %2216 = vst.msk [vmem:[%s527 + $0xc] sm:$0xf] %vm2212, %v2167
        %2217 = vst.msk [vmem:[%s527 + $0x10] sm:$0xf] %vm2212, %v2168
        %2218 = vst.msk [vmem:[%s527 + $0x14] sm:$0xf] %vm2212, %v2169
        %2219 = vst.msk [vmem:[%s527 + $0x18] sm:$0xf] %vm2212, %v2170
        %2220 = vst.msk [vmem:[%s527 + $0x1c] sm:$0xf] %vm2212, %v2171
        %2221 = vst.msk [vmem:[%s527 + $0x20] sm:$0xf] %vm2212, %v2172
        %2222 = vst.msk [vmem:[%s527 + $0x24] sm:$0xf] %vm2212, %v2173
        %2223 = vst.msk [vmem:[%s527 + $0x28] sm:$0xf] %vm2212, %v2174
        %2224 = vst.msk [vmem:[%s527 + $0x2c] sm:$0xf] %vm2212, %v2175
        %2225 = vst.msk [vmem:[%s527 + $0x30] sm:$0xf] %vm2212, %v2176
        %2226 = vst.msk [vmem:[%s527 + $0x34] sm:$0xf] %vm2212, %v2177
        %2227 = vst.msk [vmem:[%s527 + $0x38] sm:$0xf] %vm2212, %v2178
        %2228 = vst.msk [vmem:[%s527 + $0x3c] sm:$0xf] %vm2212, %v2179
        %2229 = vst.msk [vmem:[%s527 + $0x40] sm:$0xf] %vm2212, %v2180
        %2230 = vst.msk [vmem:[%s527 + $0x44] sm:$0xf] %vm2212, %v2181
        %2231 = vst.msk [vmem:[%s527 + $0x48] sm:$0xf] %vm2212, %v2182
        %2232 = vst.msk [vmem:[%s527 + $0x4c] sm:$0xf] %vm2212, %v2183
        %2233 = vst.msk [vmem:[%s527 + $0x50] sm:$0xf] %vm2212, %v2184
        %2234 = vst.msk [vmem:[%s527 + $0x54] sm:$0xf] %vm2212, %v2185
        %2235 = vst.msk [vmem:[%s527 + $0x58] sm:$0xf] %vm2212, %v2186
        %2236 = vst.msk [vmem:[%s527 + $0x5c] sm:$0xf] %vm2212, %v2187
        %s2237 = sand.u32 %s359, 1
        %s2238 = scalar_lea.sflag [#allocation3], %s2237
        %s2239 = sand.u32 %s359, 1
        %s2240 = smul.addr %s2239, 96
        %s2241 = scalar_lea.vmem [#allocation2], %s2240
        // Predicated region
        $region73: #{tpu_custom_call.1} parent=71 // pred_check
          %p2242 = pneg %p369
        $region74: #{tpu_custom_call.1} parent=71 // pred_check_branch
          %2244 = sbr.rel (%p2242) target = $region76
        $region75: #{tpu_custom_call.1} parent=71 // pred_region
          %s2245 = smul.u32 8, %s32
          %s2246 = smul.u32 3, %s34
          %s2248 = ssub.s32 1536, 1536
          %2249 = vsyncadd %s2238, %s2248
          %s2250 = smul.addr %s2245, 3
          %s2251 = sadd.s32 %s2246, %s2250
          %s2252 = smul.addr %s33, 72
          %s2253 = sadd.s32 %s2251, %s2252
          %s2254 = smul.addr %s2253, 64
          %s2255 = scalar_lea.hbm %s13, %s2254
          %s2256 = sshll.u32 %s2241, 4
          %s2257 = int_to_ptr.vmem [resolvable:$true] %s2256
          %2262 = dma.vmem_to_hbm [thread:$0]  %s2257, 1536, %s2255, %s2238, 64, 64, 4
        $region76: #{tpu_custom_call.1} parent=71 // pred_fallthru
          _
      $region72: #{tpu_custom_call.1} parent=5 // pred_fallthru
        _
      %p2263 = scmp.le.s32.totalorder 2, %s22
      // Predicated region
      $region77: #{tpu_custom_call.1} parent=5 // pred_check
        %p2264 = pneg %p2263
      $region78: #{tpu_custom_call.1} parent=5 // pred_check_branch
        %2266 = sbr.rel (%p2264) target = $region80
      $region79: #{tpu_custom_call.1} parent=5 // pred_region
        %s2267 = ssub.s32 %s22, 2
        // Predicated region
        $region81: #{tpu_custom_call.1} parent=79 // pred_check
          %p2268 = pneg %p375
        $region82: #{tpu_custom_call.1} parent=79 // pred_check_branch
          %2270 = sbr.rel (%p2268) target = $region84
        $region83: #{tpu_custom_call.1} parent=79 // pred_region
          %s2271 = sand.u32 %s360, 1
          %s2272 = scalar_lea.sflag [#allocation3], %s2271
          %s2273 = sand.u32 %s360, 1
          %s2274 = smul.addr %s2273, 96
          %s2275 = scalar_lea.vmem [#allocation2], %s2274
          %2276 = dma.done %s2272, 1536
        $region84: #{tpu_custom_call.1} parent=79 // pred_fallthru
          _
      $region80: #{tpu_custom_call.1} parent=5 // pred_fallthru
        _
    $region6: #{tpu_custom_call.1} parent=1 // loop_footer
      %s26 = sadd.s32 1, %s22
    $region7: #{tpu_custom_call.1} parent=1 // loop_footer_branch
      %21 = sbr.rel target = $region3
    $region8: #{tpu_custom_call.1} parent=1 // loop_exit
      _
    %2277 = vsyncpa [#allocation3], 1
    %s2278 = scalar_lea.sflag [#allocation3], 1
    %2279 = vsyncpa %s2278, 1

</llo_original>
